<compile_context>
chip_gen: v6e
topology: v6e:2x2x1
jax: 0.10.0
libtpu: 0.0.40
codegen_flags: <defaults>
</compile_context>

<pallas_src>
import jax
import jax.numpy as jnp
from jax import lax
from jax.experimental import pallas as pl
from jax.experimental.pallas import tpu as pltpu

NEG_SLOPE = 0.01     # F.leaky_relu default negative_slope
NORM_EPS = 1e-12     # F.normalize default eps


def ngcf_layer_kernel(adj_ref, egok_ref, egoi_ref, wgc_ref, bgc_ref,
                      wbi_ref, bbi_ref, newe_ref, norm_ref, acc_ref):
    """One NGCF propagation layer for a (tm, *) tile of output rows.

    Grid = (row_tiles, k_tiles); k is the reduction axis of adj @ ego.
    adj streamed as (tm, tk) tiles; ego streamed twice:
      * egok: (tk, d_in) tiles (matmul RHS, pre-cast to adj dtype in wrapper),
      * egoi: (tm, d_in) f32 rows for the bi-interaction product.
    """
    k = pl.program_id(1)

    @pl.when(k == 0)
    def _():
        acc_ref[...] = jnp.zeros_like(acc_ref)

    # side_embeddings = adj @ ego   (accumulated over k tiles on the MXU).
    acc_ref[...] += jnp.dot(adj_ref[...], egok_ref[...],
                            preferred_element_type=jnp.float32)

    @pl.when(k == pl.num_programs(1) - 1)
    def _():
        side = acc_ref[...]
        ego_rows = egoi_ref[...]

        # sum_embeddings = leaky_relu(GC_Linear(side))
        gc = jnp.dot(side, wgc_ref[...],
                     preferred_element_type=jnp.float32) + bgc_ref[...]
        sum_emb = jnp.where(gc >= 0, gc, NEG_SLOPE * gc)

        # bi_embeddings = leaky_relu(Bi_Linear(ego * side))
        bi = jnp.dot(ego_rows * side, wbi_ref[...],
                     preferred_element_type=jnp.float32) + bbi_ref[...]
        bi_emb = jnp.where(bi >= 0, bi, NEG_SLOPE * bi)

        new_ego = sum_emb + bi_emb          # dropout (eval-mode / p=0) -> identity

        # F.normalize(new_ego, p=2, dim=1):
        #   x / max(||x||, eps) == x * rsqrt(max(||x||^2, eps^2))   (EUP rsqrt)
        sumsq = jnp.sum(new_ego * new_ego, axis=1, keepdims=True)
        inv = lax.rsqrt(jnp.maximum(sumsq, NORM_EPS * NORM_EPS))

        newe_ref[...] = new_ego
        norm_ref[...] = new_ego * inv


def _round_up(x, m):
    return ((x + m - 1) // m) * m


def _choose_tiles(n, tm_target, tk_target):
    """Pick 128-aligned adj tiles (tm, tk) and the padded node count."""
    tk_target = max(128, (tk_target // 128) * 128)
    tm_target = max(128, (tm_target // 128) * 128)
    tk = min(tk_target, _round_up(n, 128))
    n_pad = _round_up(n, tk)                  # multiple of tk (and of 128)
    tm = min(tm_target, n_pad)
    while n_pad % tm != 0:                    # terminates: 128 divides n_pad
        tm -= 128
    return tm, tk, n_pad


def _tile_vmem_bytes(shape, dtype):
    """Bytes of one VMEM buffer for `shape`, including (sublane, lane) padding."""
    item = jnp.dtype(dtype).itemsize
    sub = 8 * max(1, 4 // item)               # f32: 8, bf16: 16, int8: 32 sublanes
    rows = shape[-2] if len(shape) >= 2 else 1
    cols = shape[-1]
    lead = 1
    for d in shape[:-2]:
        lead *= d
    return lead * _round_up(rows, sub) * _round_up(cols, 128) * item


def _vmem_cap_bytes():
    """Generation-aware VMEM ceiling (~85% of physical), safe fallback for v7x."""
    try:
        info = pltpu.get_tpu_info()
        phys = getattr(info, "vmem_capacity_bytes", None)
        if phys:
            return int(phys * 0.85)
    except Exception:
        pass
    return 56 * 2**20      # conservative: also fits v7x's 64 MiB per-core VMEM


def ngcf_layer(adj, ego_k, ego_i, w_gc, b_gc, w_bi, b_bi, *, tm, tk):
    """One fused NGCF layer on the padded graph.  Returns (new_ego, norm)."""
    n_pad, d_in = ego_i.shape
    d_out = w_gc.shape[1]
    assert adj.shape == (n_pad, n_pad)
    assert n_pad % tm == 0 and n_pad % tk == 0
    grid = (n_pad // tm, n_pad // tk)

    # VMEM budget with lane/sublane padding and double-buffering accounted for.
    needed = (
        2 * _tile_vmem_bytes((tm, tk), adj.dtype)            # adj tiles (x2 buffers)
        + 2 * _tile_vmem_bytes((tk, d_in), ego_k.dtype)      # ego matmul RHS tiles
        + 2 * _tile_vmem_bytes((tm, d_in), ego_i.dtype)      # ego bi-interaction rows
        + 4 * _tile_vmem_bytes((d_in, d_out), jnp.float32)   # W_gc + W_bi (x2 each)
        + 4 * _tile_vmem_bytes((1, d_out), jnp.float32)      # b_gc + b_bi (x2 each)
        + 4 * _tile_vmem_bytes((tm, d_out), jnp.float32)     # 2 outputs (x2 each)
        + _tile_vmem_bytes((tm, d_in), jnp.float32)          # f32 accumulator scratch
    )
    cap = _vmem_cap_bytes()
    vmem_limit = int(min(max(int(needed * 1.5), 32 * 2**20), cap))

    new_ego, norm = pl.pallas_call(
        ngcf_layer_kernel,
        out_shape=(jax.ShapeDtypeStruct((n_pad, d_out), jnp.float32),
                   jax.ShapeDtypeStruct((n_pad, d_out), jnp.float32)),
        grid_spec=pltpu.PrefetchScalarGridSpec(
            num_scalar_prefetch=0,
            grid=grid,
            in_specs=[
                pl.BlockSpec((tm, tk), lambda i, k: (i, k)),       # adj (streamed)
                pl.BlockSpec((tk, d_in), lambda i, k: (k, 0)),     # ego, matmul RHS
                pl.BlockSpec((tm, d_in), lambda i, k: (i, 0)),     # ego, bi rows
                pl.BlockSpec((d_in, d_out), lambda i, k: (0, 0)),  # W_gc
                pl.BlockSpec((1, d_out), lambda i, k: (0, 0)),     # b_gc
                pl.BlockSpec((d_in, d_out), lambda i, k: (0, 0)),  # W_bi
                pl.BlockSpec((1, d_out), lambda i, k: (0, 0)),     # b_bi
            ],
            out_specs=[pl.BlockSpec((tm, d_out), lambda i, k: (i, 0)),
                       pl.BlockSpec((tm, d_out), lambda i, k: (i, 0))],
            scratch_shapes=[pltpu.VMEM((tm, d_in), jnp.float32)],
        ),
        compiler_params=pltpu.CompilerParams(
            dimension_semantics=("parallel", "arbitrary"),
            vmem_limit_bytes=vmem_limit),
    )(adj, ego_k, ego_i, w_gc, b_gc, w_bi, b_bi)
    return new_ego, norm


def init_params(key, n_users, n_items, embedding_dim, weight_size):
    """Deterministic synthetic parameters matching NGCF.__init__ shapes."""
    sizes = [embedding_dim] + list(weight_size)
    keys = jax.random.split(key, 2 + 4 * len(weight_size))

    def xavier(k, shape):
        bound = (6.0 / (shape[0] + shape[1])) ** 0.5
        return jax.random.uniform(k, shape, jnp.float32, -bound, bound)

    params = {
        "user_emb": xavier(keys[0], (n_users, embedding_dim)),
        "item_emb": xavier(keys[1], (n_items, embedding_dim)),
        "layers": [],
    }
    kidx = 2
    for i in range(len(weight_size)):
        d_in, d_out = sizes[i], sizes[i + 1]
        layer = {
            "w_gc": xavier(keys[kidx], (d_in, d_out)),
            "b_gc": jax.random.uniform(keys[kidx + 1], (1, d_out),
                                       jnp.float32, -0.1, 0.1),
            "w_bi": xavier(keys[kidx + 2], (d_in, d_out)),
            "b_bi": jax.random.uniform(keys[kidx + 3], (1, d_out),
                                       jnp.float32, -0.1, 0.1),
        }
        params["layers"].append(layer)
        kidx += 4
    return params


def ngcf_forward(adj, params, n_users, *, adj_dtype=jnp.bfloat16,
                 tm_target=512, tk_target=None):
    """NGCF forward pass.  bf16 adjacency by default (f32 MXU accumulation).

    torch.sparse.mm is computed as a dense matmul (adj densified);
    nn.Dropout in eval-mode / p=0 is the identity.
    """
    # TODO(synk): int8 adj (v5e/v6e) / fp8 adj (v7x) with a global scale, and
    # block-sparse tile skipping via scalar prefetch, are further HBM wins.
    ego = jnp.concatenate([params["user_emb"], params["item_emb"]], axis=0)
    n = ego.shape[0]

    if tk_target is None:
        tk_target = 2048 if jnp.dtype(adj_dtype).itemsize < 4 else 1024
    tm, tk, n_pad = _choose_tiles(n, tm_target, tk_target)

    # Pad nodes with zero rows/cols so the tuned tiles always divide extents;
    # zero adj columns guarantee pad rows never affect the real rows.
    adj_x = adj.astype(adj_dtype)
    if n_pad != n:
        adj_x = jnp.pad(adj_x, ((0, n_pad - n), (0, n_pad - n)))
        ego = jnp.pad(ego, ((0, n_pad - n), (0, 0)))

    all_embs = [ego]
    for layer in params["layers"]:
        ego_k = ego.astype(adj_x.dtype)      # pre-cast RHS once, in the wrapper
        ego, norm = ngcf_layer(adj_x, ego_k, ego,
                               layer["w_gc"], layer["b_gc"],
                               layer["w_bi"], layer["b_bi"], tm=tm, tk=tk)
        all_embs.append(norm)
    all_embs = jnp.concatenate(all_embs, axis=1)[:n]
    return all_embs[:n_users], all_embs[n_users:]


def ngcf_forward_ref(adj, params, n_users):
    """Pure-JAX f32 reference for correctness checking."""
    def lrelu(x):
        return jnp.where(x >= 0, x, NEG_SLOPE * x)

    ego = jnp.concatenate([params["user_emb"], params["item_emb"]], axis=0)
    all_embs = [ego]
    for layer in params["layers"]:
        side = adj @ ego
        sum_emb = lrelu(side @ layer["w_gc"] + layer["b_gc"])
        bi_emb = lrelu((ego * side) @ layer["w_bi"] + layer["b_bi"])
        ego = sum_emb + bi_emb
        nrm = jnp.maximum(jnp.sqrt(jnp.sum(ego * ego, axis=1, keepdims=True)),
                          NORM_EPS)
        all_embs.append(ego / nrm)
    all_embs = jnp.concatenate(all_embs, axis=1)
    return all_embs[:n_users], all_embs[n_users:]


if __name__ == "__main__":
    # Small NGCF config
    n_users, n_items = 64, 192          # N = 256 graph nodes
    embedding_dim = 32
    weight_size = [32, 16]              # 2 propagation layers
    N = n_users + n_items

    key = jax.random.PRNGKey(0)
    k_params, k_adj_val, k_adj_mask = jax.random.split(key, 3)

    params = init_params(k_params, n_users, n_items, embedding_dim, weight_size)

    # Synthetic (dense) normalized adjacency: sparse-ish random graph.
    vals = jax.random.uniform(k_adj_val, (N, N), jnp.float32)
    mask = (jax.random.uniform(k_adj_mask, (N, N)) < 0.1).astype(jnp.float32)
    adj = vals * mask
    adj = adj / (jnp.sum(adj, axis=1, keepdims=True) + 1e-8)

    u_ref, i_ref = ngcf_forward_ref(adj, params, n_users)

    # f32 adjacency path: strict check vs the pure-JAX reference.
    u_f32, i_f32 = ngcf_forward(adj, params, n_users, adj_dtype=jnp.float32)
    u_f32 = jax.block_until_ready(u_f32)
    i_f32 = jax.block_until_ready(i_f32)
    assert u_f32.shape == (n_users, embedding_dim + sum(weight_size))
    assert i_f32.shape == (n_items, embedding_dim + sum(weight_size))
    assert jnp.allclose(u_f32, u_ref, atol=1e-4, rtol=1e-4)
    assert jnp.allclose(i_f32, i_ref, atol=1e-4, rtol=1e-4)

    # Default bf16 adjacency path (halves dominant HBM traffic): loose check.
    u_bf, i_bf = ngcf_forward(adj, params, n_users)
    u_bf = jax.block_until_ready(u_bf)
    i_bf = jax.block_until_ready(i_bf)
    assert u_bf.shape == (n_users, embedding_dim + sum(weight_size))
    assert i_bf.shape == (n_items, embedding_dim + sum(weight_size))
    assert jnp.allclose(u_bf, u_ref, atol=5e-2, rtol=5e-2)
    assert jnp.allclose(i_bf, i_ref, atol=5e-2, rtol=5e-2)

    print("KERNEL_OK")
</pallas_src>

<mosaic_0001>
module attributes {stable_mosaic.version = 11 : i64} {
  func.func @ngcf_layer_kernel(%arg0: i32, %arg1: i32, %arg2: memref<256x256xf32, #tpu.memory_space<vmem>>, %arg3: memref<256x32xf32, #tpu.memory_space<vmem>>, %arg4: memref<256x32xf32, #tpu.memory_space<vmem>>, %arg5: memref<32x32xf32, #tpu.memory_space<vmem>>, %arg6: memref<1x32xf32, #tpu.memory_space<vmem>>, %arg7: memref<32x32xf32, #tpu.memory_space<vmem>>, %arg8: memref<1x32xf32, #tpu.memory_space<vmem>>, %arg9: memref<256x32xf32, #tpu.memory_space<vmem>>, %arg10: memref<256x32xf32, #tpu.memory_space<vmem>>, %arg11: memref<256x32xf32, #tpu.memory_space<vmem>>) attributes {dimension_semantics = [#tpu.dimension_semantics<parallel>, #tpu.dimension_semantics<arbitrary>], iteration_bounds = array<i64: 1, 1>, scalar_prefetch = 0 : i64, scratch_operands = 1 : i64, tpu.core_type = #tpu.core_type<tc>, window_params = [{transform_indices = @transform_0, window_bounds = array<i64: 256, 256>}, {transform_indices = @transform_1, window_bounds = array<i64: 256, 32>}, {transform_indices = @transform_2, window_bounds = array<i64: 256, 32>}, {pipeline_mode = #tpu.pipeline_mode<synchronous>, transform_indices = @transform_3, window_bounds = array<i64: 32, 32>}, {pipeline_mode = #tpu.pipeline_mode<synchronous>, transform_indices = @transform_4, window_bounds = array<i64: 1, 32>}, {pipeline_mode = #tpu.pipeline_mode<synchronous>, transform_indices = @transform_5, window_bounds = array<i64: 32, 32>}, {pipeline_mode = #tpu.pipeline_mode<synchronous>, transform_indices = @transform_6, window_bounds = array<i64: 1, 32>}, {transform_indices = @transform_7, window_bounds = array<i64: 256, 32>}, {transform_indices = @transform_8, window_bounds = array<i64: 256, 32>}]} {
    %c0_i32 = arith.constant 0 : i32
    %0 = arith.cmpi eq, %arg1, %c0_i32 : i32
    %1 = arith.extui %0 : i1 to i32
    %c0_i32_0 = arith.constant 0 : i32
    %2 = arith.cmpi ne, %1, %c0_i32_0 : i32
    scf.if %2 {
      %cst_10 = arith.constant 0.000000e+00 : f32
      %12 = vector.broadcast %cst_10 : f32 to vector<256x32xf32>
      %c0_11 = arith.constant 0 : index
      %c0_12 = arith.constant 0 : index
      %13 = vector.load %arg11[%c0_11, %c0_12] : memref<256x32xf32, #tpu.memory_space<vmem>>, vector<256x32xf32>
      tpu.vector_store %arg11[%c0_11, %c0_12], %12 {strides = array<i32>} : memref<256x32xf32, #tpu.memory_space<vmem>>, vector<256x32xf32>,
    } else {
    }
    %c0 = arith.constant 0 : index
    %c0_1 = arith.constant 0 : index
    %3 = vector.load %arg11[%c0, %c0_1] : memref<256x32xf32, #tpu.memory_space<vmem>>, vector<256x32xf32>
    %c0_2 = arith.constant 0 : index
    %c0_3 = arith.constant 0 : index
    %4 = vector.load %arg2[%c0_2, %c0_3] : memref<256x256xf32, #tpu.memory_space<vmem>>, vector<256x256xf32>
    %c0_4 = arith.constant 0 : index
    %c0_5 = arith.constant 0 : index
    %5 = vector.load %arg3[%c0_4, %c0_5] : memref<256x32xf32, #tpu.memory_space<vmem>>, vector<256x32xf32>
    %cst = arith.constant dense<0.000000e+00> : vector<256x32xf32>
    %6 = tpu.matmul %4, %5, %cst {dimension_numbers = #tpu.dot_dimension_numbers<[1], [0], [0], [1], [0, 0, 1, 1], [], []>} : vector<256x256xf32>, vector<256x32xf32>, vector<256x32xf32> -> vector<256x32xf32>
    %7 = arith.addf %3, %6 : vector<256x32xf32>
    %c0_6 = arith.constant 0 : index
    %c0_7 = arith.constant 0 : index
    %8 = vector.load %arg11[%c0_6, %c0_7] : memref<256x32xf32, #tpu.memory_space<vmem>>, vector<256x32xf32>
    tpu.vector_store %arg11[%c0_6, %c0_7], %7 {strides = array<i32>} : memref<256x32xf32, #tpu.memory_space<vmem>>, vector<256x32xf32>,
    %c0_i32_8 = arith.constant 0 : i32
    %9 = arith.cmpi eq, %arg1, %c0_i32_8 : i32
    %10 = arith.extui %9 : i1 to i32
    %c0_i32_9 = arith.constant 0 : i32
    %11 = arith.cmpi ne, %10, %c0_i32_9 : i32
    scf.if %11 {
      %c0_10 = arith.constant 0 : index
      %c0_11 = arith.constant 0 : index
      %12 = vector.load %arg11[%c0_10, %c0_11] : memref<256x32xf32, #tpu.memory_space<vmem>>, vector<256x32xf32>
      %c0_12 = arith.constant 0 : index
      %c0_13 = arith.constant 0 : index
      %13 = vector.load %arg4[%c0_12, %c0_13] : memref<256x32xf32, #tpu.memory_space<vmem>>, vector<256x32xf32>
      %c0_14 = arith.constant 0 : index
      %c0_15 = arith.constant 0 : index
      %14 = vector.load %arg5[%c0_14, %c0_15] : memref<32x32xf32, #tpu.memory_space<vmem>>, vector<32x32xf32>
      %cst_16 = arith.constant dense<0.000000e+00> : vector<256x32xf32>
      %15 = tpu.matmul %12, %14, %cst_16 {dimension_numbers = #tpu.dot_dimension_numbers<[1], [0], [0], [1], [0, 0, 1, 1], [], []>} : vector<256x32xf32>, vector<32x32xf32>, vector<256x32xf32> -> vector<256x32xf32>
      %c0_17 = arith.constant 0 : index
      %c0_18 = arith.constant 0 : index
      %16 = vector.load %arg6[%c0_17, %c0_18] : memref<1x32xf32, #tpu.memory_space<vmem>>, vector<1x32xf32>
      %17 = vector.broadcast %16 : vector<1x32xf32> to vector<256x32xf32>
      %18 = arith.addf %15, %17 : vector<256x32xf32>
      %cst_19 = arith.constant 0.000000e+00 : f32
      %19 = vector.broadcast %cst_19 : f32 to vector<256x32xf32>
      %20 = arith.cmpf oge, %18, %19 : vector<256x32xf32>
      %cst_20 = arith.constant 0.00999999977 : f32
      %21 = vector.broadcast %cst_20 : f32 to vector<256x32xf32>
      %22 = arith.mulf %21, %18 : vector<256x32xf32>
      %23 = arith.select %20, %18, %22 : vector<256x32xi1>, vector<256x32xf32>
      %24 = arith.mulf %13, %12 : vector<256x32xf32>
      %c0_21 = arith.constant 0 : index
      %c0_22 = arith.constant 0 : index
      %25 = vector.load %arg7[%c0_21, %c0_22] : memref<32x32xf32, #tpu.memory_space<vmem>>, vector<32x32xf32>
      %cst_23 = arith.constant dense<0.000000e+00> : vector<256x32xf32>
      %26 = tpu.matmul %24, %25, %cst_23 {dimension_numbers = #tpu.dot_dimension_numbers<[1], [0], [0], [1], [0, 0, 1, 1], [], []>} : vector<256x32xf32>, vector<32x32xf32>, vector<256x32xf32> -> vector<256x32xf32>
      %c0_24 = arith.constant 0 : index
      %c0_25 = arith.constant 0 : index
      %27 = vector.load %arg8[%c0_24, %c0_25] : memref<1x32xf32, #tpu.memory_space<vmem>>, vector<1x32xf32>
      %28 = vector.broadcast %27 : vector<1x32xf32> to vector<256x32xf32>
      %29 = arith.addf %26, %28 : vector<256x32xf32>
      %cst_26 = arith.constant 0.000000e+00 : f32
      %30 = vector.broadcast %cst_26 : f32 to vector<256x32xf32>
      %31 = arith.cmpf oge, %29, %30 : vector<256x32xf32>
      %cst_27 = arith.constant 0.00999999977 : f32
      %32 = vector.broadcast %cst_27 : f32 to vector<256x32xf32>
      %33 = arith.mulf %32, %29 : vector<256x32xf32>
      %34 = arith.select %31, %29, %33 : vector<256x32xi1>, vector<256x32xf32>
      %35 = arith.addf %23, %34 : vector<256x32xf32>
      %36 = arith.mulf %35, %35 : vector<256x32xf32>
      %cst_28 = arith.constant dense<0.000000e+00> : vector<256xf32>
      %37 = vector.multi_reduction <add>, %36, %cst_28 [1] : vector<256x32xf32> to vector<256xf32>
      %38 = vector.shape_cast %37 : vector<256xf32> to vector<256x1xf32>
      %cst_29 = arith.constant 1.000000e-24 : f32
      %39 = vector.broadcast %cst_29 : f32 to vector<256x1xf32>
      %40 = arith.maximumf %38, %39 : vector<256x1xf32>
      %41 = math.rsqrt %40 : vector<256x1xf32>
      %c0_30 = arith.constant 0 : index
      %c0_31 = arith.constant 0 : index
      %42 = vector.load %arg9[%c0_30, %c0_31] : memref<256x32xf32, #tpu.memory_space<vmem>>, vector<256x32xf32>
      tpu.vector_store %arg9[%c0_30, %c0_31], %35 {strides = array<i32>} : memref<256x32xf32, #tpu.memory_space<vmem>>, vector<256x32xf32>,
      %43 = vector.broadcast %41 : vector<256x1xf32> to vector<256x32xf32>
      %44 = arith.mulf %35, %43 : vector<256x32xf32>
      %c0_32 = arith.constant 0 : index
      %c0_33 = arith.constant 0 : index
      %45 = vector.load %arg10[%c0_32, %c0_33] : memref<256x32xf32, #tpu.memory_space<vmem>>, vector<256x32xf32>
      tpu.vector_store %arg10[%c0_32, %c0_33], %44 {strides = array<i32>} : memref<256x32xf32, #tpu.memory_space<vmem>>, vector<256x32xf32>,
    } else {
    }
    return
  }
  func.func @transform_0(%arg0: i32, %arg1: i32) -> (i32, i32) {
    %c0_i32 = arith.constant 0 : i32
    return %arg0, %arg1 : i32, i32
  }
  func.func @transform_1(%arg0: i32, %arg1: i32) -> (i32, i32) {
    %c0_i32 = arith.constant 0 : i32
    %c0_i32_0 = arith.constant 0 : i32
    return %arg1, %c0_i32 : i32, i32
  }
  func.func @transform_2(%arg0: i32, %arg1: i32) -> (i32, i32) {
    %c0_i32 = arith.constant 0 : i32
    %c0_i32_0 = arith.constant 0 : i32
    return %arg0, %c0_i32 : i32, i32
  }
  func.func @transform_3(%arg0: i32, %arg1: i32) -> (i32, i32) {
    %c0_i32 = arith.constant 0 : i32
    %c0_i32_0 = arith.constant 0 : i32
    %c0_i32_1 = arith.constant 0 : i32
    return %c0_i32, %c0_i32_0 : i32, i32
  }
  func.func @transform_4(%arg0: i32, %arg1: i32) -> (i32, i32) {
    %c0_i32 = arith.constant 0 : i32
    %c0_i32_0 = arith.constant 0 : i32
    %c0_i32_1 = arith.constant 0 : i32
    return %c0_i32, %c0_i32_0 : i32, i32
  }
  func.func @transform_5(%arg0: i32, %arg1: i32) -> (i32, i32) {
    %c0_i32 = arith.constant 0 : i32
    %c0_i32_0 = arith.constant 0 : i32
    %c0_i32_1 = arith.constant 0 : i32
    return %c0_i32, %c0_i32_0 : i32, i32
  }
  func.func @transform_6(%arg0: i32, %arg1: i32) -> (i32, i32) {
    %c0_i32 = arith.constant 0 : i32
    %c0_i32_0 = arith.constant 0 : i32
    %c0_i32_1 = arith.constant 0 : i32
    return %c0_i32, %c0_i32_0 : i32, i32
  }
  func.func @transform_7(%arg0: i32, %arg1: i32) -> (i32, i32) {
    %c0_i32 = arith.constant 0 : i32
    %c0_i32_0 = arith.constant 0 : i32
    return %arg0, %c0_i32 : i32, i32
  }
  func.func @transform_8(%arg0: i32, %arg1: i32) -> (i32, i32) {
    %c0_i32 = arith.constant 0 : i32
    %c0_i32_0 = arith.constant 0 : i32
    return %arg0, %c0_i32 : i32, i32
  }
}

</mosaic_0001>

<llo_original>
// kernel: tpu_custom_call.1
$region0: #{tpu_custom_call.1}
  #allocation0 [shape = 'u32[]', space=smem, size = 0x4, offset = 0x4, fixed_abs, tag = 'smem constant byte address 0x4 - core index']
  #allocation1 [shape = 'u32[144,128]{1,0:T(1,128)}', space=vmem, size = 0x12000, scoped, tag = 'internal scratch']
  #allocation2 [shape = 'f32[256,32]{1,0:T(8,128)}', space=vmem, size = 0x20000, scoped, tag = 'scratch operand']
  %s0 = inlined_call_operand.vmem [shape: f32[256,256], index: 0, kind: input, shape index: {}]
  %s1 = inlined_call_operand.vmem [shape: f32[256,32], index: 1, kind: input, shape index: {}]
  %s2 = inlined_call_operand.vmem [shape: f32[256,32], index: 2, kind: input, shape index: {}]
  %s3 = inlined_call_operand.vmem [shape: f32[32,32], index: 3, kind: input, shape index: {}]
  %s4 = inlined_call_operand.vmem [shape: f32[1,32], index: 4, kind: input, shape index: {}]
  %s5 = inlined_call_operand.vmem [shape: f32[32,32], index: 5, kind: input, shape index: {}]
  %s6 = inlined_call_operand.vmem [shape: f32[1,32], index: 6, kind: input, shape index: {}]
  %s7 = inlined_call_operand.vmem [shape: f32[256,32], index: 7, kind: output, shape index: {0}]
  %s8 = inlined_call_operand.vmem [shape: f32[256,32], index: 8, kind: output, shape index: {1}]
  %9 = xla_tuple %s7, %s8
  %s10 = sld [smem:[#allocation0]]
  $region54: #{tpu_custom_call.1} parent=0
    _
  %s12 = ssub.s32 1, %s10
  %s13 = scalar_select 0, %s12, %s10
  // Predicated region
  $region2: #{tpu_custom_call.1} parent=0 // pred_check
    _
  $region3: #{tpu_custom_call.1} parent=0 // pred_check_branch
    %15 = sbr.rel (0) target = $region5
  $region4: #{tpu_custom_call.1} parent=0 // pred_region
    _
  $region5: #{tpu_custom_call.1} parent=0 // pred_fallthru
    _
  // Predicated region
  $region6: #{tpu_custom_call.1} parent=0 // pred_check
    _
  $region7: #{tpu_custom_call.1} parent=0 // pred_check_branch
    %17 = sbr.rel (0) target = $region9
  $region8: #{tpu_custom_call.1} parent=0 // pred_region
    _
  $region9: #{tpu_custom_call.1} parent=0 // pred_fallthru
    _
  // Predicated region
  $region10: #{tpu_custom_call.1} parent=0 // pred_check
    _
  $region11: #{tpu_custom_call.1} parent=0 // pred_check_branch
    %19 = sbr.rel (0) target = $region13
  $region12: #{tpu_custom_call.1} parent=0 // pred_region
    _
  $region13: #{tpu_custom_call.1} parent=0 // pred_fallthru
    _
  // Predicated region
  $region14: #{tpu_custom_call.1} parent=0 // pred_check
    _
  $region15: #{tpu_custom_call.1} parent=0 // pred_check_branch
    %21 = sbr.rel (0) target = $region17
  $region16: #{tpu_custom_call.1} parent=0 // pred_region
    _
  $region17: #{tpu_custom_call.1} parent=0 // pred_fallthru
    _
  // Predicated region
  $region18: #{tpu_custom_call.1} parent=0 // pred_check
    _
  $region19: #{tpu_custom_call.1} parent=0 // pred_check_branch
    %23 = sbr.rel (0) target = $region21
  $region20: #{tpu_custom_call.1} parent=0 // pred_region
    _
  $region21: #{tpu_custom_call.1} parent=0 // pred_fallthru
    _
  // Predicated region
  $region22: #{tpu_custom_call.1} parent=0 // pred_check
    _
  $region23: #{tpu_custom_call.1} parent=0 // pred_check_branch
    %25 = sbr.rel (0) target = $region25
  $region24: #{tpu_custom_call.1} parent=0 // pred_region
    _
  $region25: #{tpu_custom_call.1} parent=0 // pred_fallthru
    _
  // Predicated region
  $region26: #{tpu_custom_call.1} parent=0 // pred_check
    _
  $region27: #{tpu_custom_call.1} parent=0 // pred_check_branch
    %27 = sbr.rel (0) target = $region29
  $region28: #{tpu_custom_call.1} parent=0 // pred_region
    _
  $region29: #{tpu_custom_call.1} parent=0 // pred_fallthru
    _
  %p28 = scmp.eq.s32.totalorder 0, 0
  // Predicated region
  $region30: #{tpu_custom_call.1} parent=0 // pred_check
    %p29 = pneg %p28
  $region31: #{tpu_custom_call.1} parent=0 // pred_check_branch
    %31 = sbr.rel (%p29) target = $region33
  $region32: #{tpu_custom_call.1} parent=0 // pred_region
    %vm32 = vcmask 261120
    %33 = vst.msk [vmem:[#allocation2] sm:$0xff] %vm32, 0.0
    %34 = vst.msk [vmem:[#allocation2 + $0x8] sm:$0xff] %vm32, 0.0
    %35 = vst.msk [vmem:[#allocation2 + $0x10] sm:$0xff] %vm32, 0.0
    %36 = vst.msk [vmem:[#allocation2 + $0x18] sm:$0xff] %vm32, 0.0
    %37 = vst.msk [vmem:[#allocation2 + $0x20] sm:$0xff] %vm32, 0.0
    %38 = vst.msk [vmem:[#allocation2 + $0x28] sm:$0xff] %vm32, 0.0
    %39 = vst.msk [vmem:[#allocation2 + $0x30] sm:$0xff] %vm32, 0.0
    %40 = vst.msk [vmem:[#allocation2 + $0x38] sm:$0xff] %vm32, 0.0
    %41 = vst.msk [vmem:[#allocation2 + $0x40] sm:$0xff] %vm32, 0.0
    %42 = vst.msk [vmem:[#allocation2 + $0x48] sm:$0xff] %vm32, 0.0
    %43 = vst.msk [vmem:[#allocation2 + $0x50] sm:$0xff] %vm32, 0.0
    %44 = vst.msk [vmem:[#allocation2 + $0x58] sm:$0xff] %vm32, 0.0
    %45 = vst.msk [vmem:[#allocation2 + $0x60] sm:$0xff] %vm32, 0.0
    %46 = vst.msk [vmem:[#allocation2 + $0x68] sm:$0xff] %vm32, 0.0
    %47 = vst.msk [vmem:[#allocation2 + $0x70] sm:$0xff] %vm32, 0.0
    %48 = vst.msk [vmem:[#allocation2 + $0x78] sm:$0xff] %vm32, 0.0
    %49 = vst.msk [vmem:[#allocation2 + $0x80] sm:$0xff] %vm32, 0.0
    %50 = vst.msk [vmem:[#allocation2 + $0x88] sm:$0xff] %vm32, 0.0
    %51 = vst.msk [vmem:[#allocation2 + $0x90] sm:$0xff] %vm32, 0.0
    %52 = vst.msk [vmem:[#allocation2 + $0x98] sm:$0xff] %vm32, 0.0
    %53 = vst.msk [vmem:[#allocation2 + $0xa0] sm:$0xff] %vm32, 0.0
    %54 = vst.msk [vmem:[#allocation2 + $0xa8] sm:$0xff] %vm32, 0.0
    %55 = vst.msk [vmem:[#allocation2 + $0xb0] sm:$0xff] %vm32, 0.0
    %56 = vst.msk [vmem:[#allocation2 + $0xb8] sm:$0xff] %vm32, 0.0
    %57 = vst.msk [vmem:[#allocation2 + $0xc0] sm:$0xff] %vm32, 0.0
    %58 = vst.msk [vmem:[#allocation2 + $0xc8] sm:$0xff] %vm32, 0.0
    %59 = vst.msk [vmem:[#allocation2 + $0xd0] sm:$0xff] %vm32, 0.0
    %60 = vst.msk [vmem:[#allocation2 + $0xd8] sm:$0xff] %vm32, 0.0
    %61 = vst.msk [vmem:[#allocation2 + $0xe0] sm:$0xff] %vm32, 0.0
    %62 = vst.msk [vmem:[#allocation2 + $0xe8] sm:$0xff] %vm32, 0.0
    %63 = vst.msk [vmem:[#allocation2 + $0xf0] sm:$0xff] %vm32, 0.0
    %64 = vst.msk [vmem:[#allocation2 + $0xf8] sm:$0xff] %vm32, 0.0
  $region33: #{tpu_custom_call.1} parent=0 // pred_fallthru
    _
  %v65 = vld [vmem:[#allocation2] sm:$0xff]
  %v66 = vld [vmem:[#allocation2 + $0x8] sm:$0xff]
  %v67 = vld [vmem:[#allocation2 + $0x10] sm:$0xff]
  %v68 = vld [vmem:[#allocation2 + $0x18] sm:$0xff]
  %v69 = vld [vmem:[#allocation2 + $0x20] sm:$0xff]
  %v70 = vld [vmem:[#allocation2 + $0x28] sm:$0xff]
  %v71 = vld [vmem:[#allocation2 + $0x30] sm:$0xff]
  %v72 = vld [vmem:[#allocation2 + $0x38] sm:$0xff]
  %v73 = vld [vmem:[#allocation2 + $0x40] sm:$0xff]
  %v74 = vld [vmem:[#allocation2 + $0x48] sm:$0xff]
  %v75 = vld [vmem:[#allocation2 + $0x50] sm:$0xff]
  %v76 = vld [vmem:[#allocation2 + $0x58] sm:$0xff]
  %v77 = vld [vmem:[#allocation2 + $0x60] sm:$0xff]
  %v78 = vld [vmem:[#allocation2 + $0x68] sm:$0xff]
  %v79 = vld [vmem:[#allocation2 + $0x70] sm:$0xff]
  %v80 = vld [vmem:[#allocation2 + $0x78] sm:$0xff]
  %v81 = vld [vmem:[#allocation2 + $0x80] sm:$0xff]
  %v82 = vld [vmem:[#allocation2 + $0x88] sm:$0xff]
  %v83 = vld [vmem:[#allocation2 + $0x90] sm:$0xff]
  %v84 = vld [vmem:[#allocation2 + $0x98] sm:$0xff]
  %v85 = vld [vmem:[#allocation2 + $0xa0] sm:$0xff]
  %v86 = vld [vmem:[#allocation2 + $0xa8] sm:$0xff]
  %v87 = vld [vmem:[#allocation2 + $0xb0] sm:$0xff]
  %v88 = vld [vmem:[#allocation2 + $0xb8] sm:$0xff]
  %v89 = vld [vmem:[#allocation2 + $0xc0] sm:$0xff]
  %v90 = vld [vmem:[#allocation2 + $0xc8] sm:$0xff]
  %v91 = vld [vmem:[#allocation2 + $0xd0] sm:$0xff]
  %v92 = vld [vmem:[#allocation2 + $0xd8] sm:$0xff]
  %v93 = vld [vmem:[#allocation2 + $0xe0] sm:$0xff]
  %v94 = vld [vmem:[#allocation2 + $0xe8] sm:$0xff]
  %v95 = vld [vmem:[#allocation2 + $0xf0] sm:$0xff]
  %v96 = vld [vmem:[#allocation2 + $0xf8] sm:$0xff]
  %v97 = vld [vmem:[%s0] sm:$0xff]
  %v98 = vld [vmem:[%s0 + $0x8] sm:$0xff]
  %v99 = vld [vmem:[%s0 + $0x10] sm:$0xff]
  %v100 = vld [vmem:[%s0 + $0x18] sm:$0xff]
  %v101 = vld [vmem:[%s0 + $0x20] sm:$0xff]
  %v102 = vld [vmem:[%s0 + $0x28] sm:$0xff]
  %v103 = vld [vmem:[%s0 + $0x30] sm:$0xff]
  %v104 = vld [vmem:[%s0 + $0x38] sm:$0xff]
  %v105 = vld [vmem:[%s0 + $0x40] sm:$0xff]
  %v106 = vld [vmem:[%s0 + $0x48] sm:$0xff]
  %v107 = vld [vmem:[%s0 + $0x50] sm:$0xff]
  %v108 = vld [vmem:[%s0 + $0x58] sm:$0xff]
  %v109 = vld [vmem:[%s0 + $0x60] sm:$0xff]
  %v110 = vld [vmem:[%s0 + $0x68] sm:$0xff]
  %v111 = vld [vmem:[%s0 + $0x70] sm:$0xff]
  %v112 = vld [vmem:[%s0 + $0x78] sm:$0xff]
  %v113 = vld [vmem:[%s0 + $0x80] sm:$0xff]
  %v114 = vld [vmem:[%s0 + $0x88] sm:$0xff]
  %v115 = vld [vmem:[%s0 + $0x90] sm:$0xff]
  %v116 = vld [vmem:[%s0 + $0x98] sm:$0xff]
  %v117 = vld [vmem:[%s0 + $0xa0] sm:$0xff]
  %v118 = vld [vmem:[%s0 + $0xa8] sm:$0xff]
  %v119 = vld [vmem:[%s0 + $0xb0] sm:$0xff]
  %v120 = vld [vmem:[%s0 + $0xb8] sm:$0xff]
  %v121 = vld [vmem:[%s0 + $0xc0] sm:$0xff]
  %v122 = vld [vmem:[%s0 + $0xc8] sm:$0xff]
  %v123 = vld [vmem:[%s0 + $0xd0] sm:$0xff]
  %v124 = vld [vmem:[%s0 + $0xd8] sm:$0xff]
  %v125 = vld [vmem:[%s0 + $0xe0] sm:$0xff]
  %v126 = vld [vmem:[%s0 + $0xe8] sm:$0xff]
  %v127 = vld [vmem:[%s0 + $0xf0] sm:$0xff]
  %v128 = vld [vmem:[%s0 + $0xf8] sm:$0xff]
  %v129 = vld [vmem:[%s0 + $0x100] sm:$0xff]
  %v130 = vld [vmem:[%s0 + $0x108] sm:$0xff]
  %v131 = vld [vmem:[%s0 + $0x110] sm:$0xff]
  %v132 = vld [vmem:[%s0 + $0x118] sm:$0xff]
  %v133 = vld [vmem:[%s0 + $0x120] sm:$0xff]
  %v134 = vld [vmem:[%s0 + $0x128] sm:$0xff]
  %v135 = vld [vmem:[%s0 + $0x130] sm:$0xff]
  %v136 = vld [vmem:[%s0 + $0x138] sm:$0xff]
  %v137 = vld [vmem:[%s0 + $0x140] sm:$0xff]
  %v138 = vld [vmem:[%s0 + $0x148] sm:$0xff]
  %v139 = vld [vmem:[%s0 + $0x150] sm:$0xff]
  %v140 = vld [vmem:[%s0 + $0x158] sm:$0xff]
  %v141 = vld [vmem:[%s0 + $0x160] sm:$0xff]
  %v142 = vld [vmem:[%s0 + $0x168] sm:$0xff]
  %v143 = vld [vmem:[%s0 + $0x170] sm:$0xff]
  %v144 = vld [vmem:[%s0 + $0x178] sm:$0xff]
  %v145 = vld [vmem:[%s0 + $0x180] sm:$0xff]
  %v146 = vld [vmem:[%s0 + $0x188] sm:$0xff]
  %v147 = vld [vmem:[%s0 + $0x190] sm:$0xff]
  %v148 = vld [vmem:[%s0 + $0x198] sm:$0xff]
  %v149 = vld [vmem:[%s0 + $0x1a0] sm:$0xff]
  %v150 = vld [vmem:[%s0 + $0x1a8] sm:$0xff]
  %v151 = vld [vmem:[%s0 + $0x1b0] sm:$0xff]
  %v152 = vld [vmem:[%s0 + $0x1b8] sm:$0xff]
  %v153 = vld [vmem:[%s0 + $0x1c0] sm:$0xff]
  %v154 = vld [vmem:[%s0 + $0x1c8] sm:$0xff]
  %v155 = vld [vmem:[%s0 + $0x1d0] sm:$0xff]
  %v156 = vld [vmem:[%s0 + $0x1d8] sm:$0xff]
  %v157 = vld [vmem:[%s0 + $0x1e0] sm:$0xff]
  %v158 = vld [vmem:[%s0 + $0x1e8] sm:$0xff]
  %v159 = vld [vmem:[%s0 + $0x1f0] sm:$0xff]
  %v160 = vld [vmem:[%s0 + $0x1f8] sm:$0xff]
  %v161 = vld [vmem:[%s1] sm:$0xff]
  %v162 = vld [vmem:[%s1 + $0x8] sm:$0xff]
  %v163 = vld [vmem:[%s1 + $0x10] sm:$0xff]
  %v164 = vld [vmem:[%s1 + $0x18] sm:$0xff]
  %v165 = vld [vmem:[%s1 + $0x20] sm:$0xff]
  %v166 = vld [vmem:[%s1 + $0x28] sm:$0xff]
  %v167 = vld [vmem:[%s1 + $0x30] sm:$0xff]
  %v168 = vld [vmem:[%s1 + $0x38] sm:$0xff]
  %v169 = vld [vmem:[%s1 + $0x40] sm:$0xff]
  %v170 = vld [vmem:[%s1 + $0x48] sm:$0xff]
  %v171 = vld [vmem:[%s1 + $0x50] sm:$0xff]
  %v172 = vld [vmem:[%s1 + $0x58] sm:$0xff]
  %v173 = vld [vmem:[%s1 + $0x60] sm:$0xff]
  %v174 = vld [vmem:[%s1 + $0x68] sm:$0xff]
  %v175 = vld [vmem:[%s1 + $0x70] sm:$0xff]
  %v176 = vld [vmem:[%s1 + $0x78] sm:$0xff]
  %v177 = vld [vmem:[%s1 + $0x80] sm:$0xff]
  %v178 = vld [vmem:[%s1 + $0x88] sm:$0xff]
  %v179 = vld [vmem:[%s1 + $0x90] sm:$0xff]
  %v180 = vld [vmem:[%s1 + $0x98] sm:$0xff]
  %v181 = vld [vmem:[%s1 + $0xa0] sm:$0xff]
  %v182 = vld [vmem:[%s1 + $0xa8] sm:$0xff]
  %v183 = vld [vmem:[%s1 + $0xb0] sm:$0xff]
  %v184 = vld [vmem:[%s1 + $0xb8] sm:$0xff]
  %v185 = vld [vmem:[%s1 + $0xc0] sm:$0xff]
  %v186 = vld [vmem:[%s1 + $0xc8] sm:$0xff]
  %v187 = vld [vmem:[%s1 + $0xd0] sm:$0xff]
  %v188 = vld [vmem:[%s1 + $0xd8] sm:$0xff]
  %v189 = vld [vmem:[%s1 + $0xe0] sm:$0xff]
  %v190 = vld [vmem:[%s1 + $0xe8] sm:$0xff]
  %v191 = vld [vmem:[%s1 + $0xf0] sm:$0xff]
  %v192 = vld [vmem:[%s1 + $0xf8] sm:$0xff]
  %193 = vmatprep.subr.mxu0 0.0
  %194 = vmatpush1.msra.mxu0 %v176
  %195 = vmatprep.subr.mxu0 0.0
  %196 = vmatpush1.msra.mxu0 %v175
  %197 = vmatprep.subr.mxu0 0.0
  %198 = vmatpush1.msra.mxu0 %v174
  %199 = vmatprep.subr.mxu0 0.0
  %200 = vmatpush1.msra.mxu0 %v173
  %201 = vmatprep.subr.mxu0 0.0
  %202 = vmatpush1.msra.mxu0 %v172
  %203 = vmatprep.subr.mxu0 0.0
  %204 = vmatpush1.msra.mxu0 %v171
  %205 = vmatprep.subr.mxu0 0.0
  %206 = vmatpush1.msra.mxu0 %v170
  %207 = vmatprep.subr.mxu0 0.0
  %208 = vmatpush1.msra.mxu0 %v169
  %209 = vmatprep.subr.mxu0 0.0
  %210 = vmatpush1.msra.mxu0 %v168
  %211 = vmatprep.subr.mxu0 0.0
  %212 = vmatpush1.msra.mxu0 %v167
  %213 = vmatprep.subr.mxu0 0.0
  %214 = vmatpush1.msra.mxu0 %v166
  %215 = vmatprep.subr.mxu0 0.0
  %216 = vmatpush1.msra.mxu0 %v165
  %217 = vmatprep.subr.mxu0 0.0
  %218 = vmatpush1.msra.mxu0 %v164
  %219 = vmatprep.subr.mxu0 0.0
  %220 = vmatpush1.msra.mxu0 %v163
  %221 = vmatprep.subr.mxu0 0.0
  %222 = vmatpush1.msra.mxu0 %v162
  %223 = vmatprep.subr.mxu0 0.0
  %224 = vmatpush1.msra.mxu0 %v161
  %225 = vmatprep.subr.mxu0 0.0
  %226 = vmatpush2.msra.mxu0 %v192
  %227 = vmatprep.subr.mxu0 0.0
  %228 = vmatpush2.msra.mxu0 %v191
  %229 = vmatprep.subr.mxu0 0.0
  %230 = vmatpush2.msra.mxu0 %v190
  %231 = vmatprep.subr.mxu0 0.0
  %232 = vmatpush2.msra.mxu0 %v189
  %233 = vmatprep.subr.mxu0 0.0
  %234 = vmatpush2.msra.mxu0 %v188
  %235 = vmatprep.subr.mxu0 0.0
  %236 = vmatpush2.msra.mxu0 %v187
  %237 = vmatprep.subr.mxu0 0.0
  %238 = vmatpush2.msra.mxu0 %v186
  %239 = vmatprep.subr.mxu0 0.0
  %240 = vmatpush2.msra.mxu0 %v185
  %241 = vmatprep.subr.mxu0 0.0
  %242 = vmatpush2.msra.mxu0 %v184
  %243 = vmatprep.subr.mxu0 0.0
  %244 = vmatpush2.msra.mxu0 %v183
  %245 = vmatprep.subr.mxu0 0.0
  %246 = vmatpush2.msra.mxu0 %v182
  %247 = vmatprep.subr.mxu0 0.0
  %248 = vmatpush2.msra.mxu0 %v181
  %249 = vmatprep.subr.mxu0 0.0
  %250 = vmatpush2.msra.mxu0 %v180
  %251 = vmatprep.subr.mxu0 0.0
  %252 = vmatpush2.msra.mxu0 %v179
  %253 = vmatprep.subr.mxu0 0.0
  %254 = vmatpush2.msra.mxu0 %v178
  %255 = vmatprep.subr.mxu0 0.0
  %256 = vmatpush2.msra.mxu0 %v177
  %257 = vmatprep.mubr.f32.mxu0 %v98
  %258 = vmatmul.mubr.f32.gmra.mxu0 %v97
  %v259 = vpop.f32.mrf.mxu0
  %v260 = vadd.f32 0.0, %v259
  %v261 = vpop.f32.mrf.mxu0
  %262 = vmatprep.mubr.f32.mxu0 %v100
  %263 = vmatmul.mubr.f32.gmra.mxu0 %v99
  %v264 = vpop.f32.mrf.mxu0
  %v265 = vadd.f32 0.0, %v264
  %v266 = vpop.f32.mrf.mxu0
  %267 = vmatprep.mubr.f32.mxu0 %v102
  %268 = vmatmul.mubr.f32.gmra.mxu0 %v101
  %v269 = vpop.f32.mrf.mxu0
  %v270 = vadd.f32 0.0, %v269
  %v271 = vpop.f32.mrf.mxu0
  %272 = vmatprep.mubr.f32.mxu0 %v104
  %273 = vmatmul.mubr.f32.gmra.mxu0 %v103
  %v274 = vpop.f32.mrf.mxu0
  %v275 = vadd.f32 0.0, %v274
  %v276 = vpop.f32.mrf.mxu0
  %277 = vmatprep.mubr.f32.mxu0 %v106
  %278 = vmatmul.mubr.f32.gmra.mxu0 %v105
  %v279 = vpop.f32.mrf.mxu0
  %v280 = vadd.f32 0.0, %v279
  %v281 = vpop.f32.mrf.mxu0
  %282 = vmatprep.mubr.f32.mxu0 %v108
  %283 = vmatmul.mubr.f32.gmra.mxu0 %v107
  %v284 = vpop.f32.mrf.mxu0
  %v285 = vadd.f32 0.0, %v284
  %v286 = vpop.f32.mrf.mxu0
  %287 = vmatprep.mubr.f32.mxu0 %v110
  %288 = vmatmul.mubr.f32.gmra.mxu0 %v109
  %v289 = vpop.f32.mrf.mxu0
  %v290 = vadd.f32 0.0, %v289
  %v291 = vpop.f32.mrf.mxu0
  %292 = vmatprep.mubr.f32.mxu0 %v112
  %293 = vmatmul.mubr.f32.gmra.mxu0 %v111
  %v294 = vpop.f32.mrf.mxu0
  %v295 = vadd.f32 0.0, %v294
  %v296 = vpop.f32.mrf.mxu0
  %297 = vmatprep.mubr.f32.mxu0 %v114
  %298 = vmatmul.mubr.f32.gmra.mxu0 %v113
  %v299 = vpop.f32.mrf.mxu0
  %v300 = vadd.f32 0.0, %v299
  %v301 = vpop.f32.mrf.mxu0
  %302 = vmatprep.mubr.f32.mxu0 %v116
  %303 = vmatmul.mubr.f32.gmra.mxu0 %v115
  %v304 = vpop.f32.mrf.mxu0
  %v305 = vadd.f32 0.0, %v304
  %v306 = vpop.f32.mrf.mxu0
  %307 = vmatprep.mubr.f32.mxu0 %v118
  %308 = vmatmul.mubr.f32.gmra.mxu0 %v117
  %v309 = vpop.f32.mrf.mxu0
  %v310 = vadd.f32 0.0, %v309
  %v311 = vpop.f32.mrf.mxu0
  %312 = vmatprep.mubr.f32.mxu0 %v120
  %313 = vmatmul.mubr.f32.gmra.mxu0 %v119
  %v314 = vpop.f32.mrf.mxu0
  %v315 = vadd.f32 0.0, %v314
  %v316 = vpop.f32.mrf.mxu0
  %317 = vmatprep.mubr.f32.mxu0 %v122
  %318 = vmatmul.mubr.f32.gmra.mxu0 %v121
  %v319 = vpop.f32.mrf.mxu0
  %v320 = vadd.f32 0.0, %v319
  %v321 = vpop.f32.mrf.mxu0
  %322 = vmatprep.mubr.f32.mxu0 %v124
  %323 = vmatmul.mubr.f32.gmra.mxu0 %v123
  %v324 = vpop.f32.mrf.mxu0
  %v325 = vadd.f32 0.0, %v324
  %v326 = vpop.f32.mrf.mxu0
  %327 = vmatprep.mubr.f32.mxu0 %v126
  %328 = vmatmul.mubr.f32.gmra.mxu0 %v125
  %v329 = vpop.f32.mrf.mxu0
  %v330 = vadd.f32 0.0, %v329
  %v331 = vpop.f32.mrf.mxu0
  %332 = vmatprep.mubr.f32.mxu0 %v128
  %333 = vmatmul.mubr.f32.gmra.mxu0 %v127
  %v334 = vpop.f32.mrf.mxu0
  %v335 = vadd.f32 0.0, %v334
  %v336 = vpop.f32.mrf.mxu0
  %337 = vmatprep.mubr.f32.mxu0 %v130
  %338 = vmatmul.mubr.f32.gmra.mxu0 %v129
  %v339 = vpop.f32.mrf.mxu0
  %v340 = vadd.f32 0.0, %v339
  %v341 = vpop.f32.mrf.mxu0
  %342 = vmatprep.mubr.f32.mxu0 %v132
  %343 = vmatmul.mubr.f32.gmra.mxu0 %v131
  %v344 = vpop.f32.mrf.mxu0
  %v345 = vadd.f32 0.0, %v344
  %v346 = vpop.f32.mrf.mxu0
  %347 = vmatprep.mubr.f32.mxu0 %v134
  %348 = vmatmul.mubr.f32.gmra.mxu0 %v133
  %v349 = vpop.f32.mrf.mxu0
  %v350 = vadd.f32 0.0, %v349
  %v351 = vpop.f32.mrf.mxu0
  %352 = vmatprep.mubr.f32.mxu0 %v136
  %353 = vmatmul.mubr.f32.gmra.mxu0 %v135
  %v354 = vpop.f32.mrf.mxu0
  %v355 = vadd.f32 0.0, %v354
  %v356 = vpop.f32.mrf.mxu0
  %357 = vmatprep.mubr.f32.mxu0 %v138
  %358 = vmatmul.mubr.f32.gmra.mxu0 %v137
  %v359 = vpop.f32.mrf.mxu0
  %v360 = vadd.f32 0.0, %v359
  %v361 = vpop.f32.mrf.mxu0
  %362 = vmatprep.mubr.f32.mxu0 %v140
  %363 = vmatmul.mubr.f32.gmra.mxu0 %v139
  %v364 = vpop.f32.mrf.mxu0
  %v365 = vadd.f32 0.0, %v364
  %v366 = vpop.f32.mrf.mxu0
  %367 = vmatprep.mubr.f32.mxu0 %v142
  %368 = vmatmul.mubr.f32.gmra.mxu0 %v141
  %v369 = vpop.f32.mrf.mxu0
  %v370 = vadd.f32 0.0, %v369
  %v371 = vpop.f32.mrf.mxu0
  %372 = vmatprep.mubr.f32.mxu0 %v144
  %373 = vmatmul.mubr.f32.gmra.mxu0 %v143
  %v374 = vpop.f32.mrf.mxu0
  %v375 = vadd.f32 0.0, %v374
  %v376 = vpop.f32.mrf.mxu0
  %377 = vmatprep.mubr.f32.mxu0 %v146
  %378 = vmatmul.mubr.f32.gmra.mxu0 %v145
  %v379 = vpop.f32.mrf.mxu0
  %v380 = vadd.f32 0.0, %v379
  %v381 = vpop.f32.mrf.mxu0
  %382 = vmatprep.mubr.f32.mxu0 %v148
  %383 = vmatmul.mubr.f32.gmra.mxu0 %v147
  %v384 = vpop.f32.mrf.mxu0
  %v385 = vadd.f32 0.0, %v384
  %v386 = vpop.f32.mrf.mxu0
  %387 = vmatprep.mubr.f32.mxu0 %v150
  %388 = vmatmul.mubr.f32.gmra.mxu0 %v149
  %v389 = vpop.f32.mrf.mxu0
  %v390 = vadd.f32 0.0, %v389
  %v391 = vpop.f32.mrf.mxu0
  %392 = vmatprep.mubr.f32.mxu0 %v152
  %393 = vmatmul.mubr.f32.gmra.mxu0 %v151
  %v394 = vpop.f32.mrf.mxu0
  %v395 = vadd.f32 0.0, %v394
  %v396 = vpop.f32.mrf.mxu0
  %397 = vmatprep.mubr.f32.mxu0 %v154
  %398 = vmatmul.mubr.f32.gmra.mxu0 %v153
  %v399 = vpop.f32.mrf.mxu0
  %v400 = vadd.f32 0.0, %v399
  %v401 = vpop.f32.mrf.mxu0
  %402 = vmatprep.mubr.f32.mxu0 %v156
  %403 = vmatmul.mubr.f32.gmra.mxu0 %v155
  %v404 = vpop.f32.mrf.mxu0
  %v405 = vadd.f32 0.0, %v404
  %v406 = vpop.f32.mrf.mxu0
  %407 = vmatprep.mubr.f32.mxu0 %v158
  %408 = vmatmul.mubr.f32.gmra.mxu0 %v157
  %v409 = vpop.f32.mrf.mxu0
  %v410 = vadd.f32 0.0, %v409
  %v411 = vpop.f32.mrf.mxu0
  %412 = vmatprep.mubr.f32.mxu0 %v160
  %413 = vmatmul.mubr.f32.gmra.mxu0 %v159
  %v414 = vpop.f32.mrf.mxu0
  %v415 = vadd.f32 0.0, %v414
  %v416 = vpop.f32.mrf.mxu0
  %417 = vdwg.mxu0
  %v418 = vadd.f32 %v65, %v260
  %v419 = vadd.f32 %v66, %v265
  %v420 = vadd.f32 %v67, %v270
  %v421 = vadd.f32 %v68, %v275
  %v422 = vadd.f32 %v69, %v280
  %v423 = vadd.f32 %v70, %v285
  %v424 = vadd.f32 %v71, %v290
  %v425 = vadd.f32 %v72, %v295
  %v426 = vadd.f32 %v73, %v300
  %v427 = vadd.f32 %v74, %v305
  %v428 = vadd.f32 %v75, %v310
  %v429 = vadd.f32 %v76, %v315
  %v430 = vadd.f32 %v77, %v320
  %v431 = vadd.f32 %v78, %v325
  %v432 = vadd.f32 %v79, %v330
  %v433 = vadd.f32 %v80, %v335
  %v434 = vadd.f32 %v81, %v340
  %v435 = vadd.f32 %v82, %v345
  %v436 = vadd.f32 %v83, %v350
  %v437 = vadd.f32 %v84, %v355
  %v438 = vadd.f32 %v85, %v360
  %v439 = vadd.f32 %v86, %v365
  %v440 = vadd.f32 %v87, %v370
  %v441 = vadd.f32 %v88, %v375
  %v442 = vadd.f32 %v89, %v380
  %v443 = vadd.f32 %v90, %v385
  %v444 = vadd.f32 %v91, %v390
  %v445 = vadd.f32 %v92, %v395
  %v446 = vadd.f32 %v93, %v400
  %v447 = vadd.f32 %v94, %v405
  %v448 = vadd.f32 %v95, %v410
  %v449 = vadd.f32 %v96, %v415
  %vm450 = vcmask 261120
  %451 = vst.msk [vmem:[#allocation2] sm:$0xff] %vm450, %v418
  %452 = vst.msk [vmem:[#allocation2 + $0x8] sm:$0xff] %vm450, %v419
  %453 = vst.msk [vmem:[#allocation2 + $0x10] sm:$0xff] %vm450, %v420
  %454 = vst.msk [vmem:[#allocation2 + $0x18] sm:$0xff] %vm450, %v421
  %455 = vst.msk [vmem:[#allocation2 + $0x20] sm:$0xff] %vm450, %v422
  %456 = vst.msk [vmem:[#allocation2 + $0x28] sm:$0xff] %vm450, %v423
  %457 = vst.msk [vmem:[#allocation2 + $0x30] sm:$0xff] %vm450, %v424
  %458 = vst.msk [vmem:[#allocation2 + $0x38] sm:$0xff] %vm450, %v425
  %459 = vst.msk [vmem:[#allocation2 + $0x40] sm:$0xff] %vm450, %v426
  %460 = vst.msk [vmem:[#allocation2 + $0x48] sm:$0xff] %vm450, %v427
  %461 = vst.msk [vmem:[#allocation2 + $0x50] sm:$0xff] %vm450, %v428
  %462 = vst.msk [vmem:[#allocation2 + $0x58] sm:$0xff] %vm450, %v429
  %463 = vst.msk [vmem:[#allocation2 + $0x60] sm:$0xff] %vm450, %v430
  %464 = vst.msk [vmem:[#allocation2 + $0x68] sm:$0xff] %vm450, %v431
  %465 = vst.msk [vmem:[#allocation2 + $0x70] sm:$0xff] %vm450, %v432
  %466 = vst.msk [vmem:[#allocation2 + $0x78] sm:$0xff] %vm450, %v433
  %467 = vst.msk [vmem:[#allocation2 + $0x80] sm:$0xff] %vm450, %v434
  %468 = vst.msk [vmem:[#allocation2 + $0x88] sm:$0xff] %vm450, %v435
  %469 = vst.msk [vmem:[#allocation2 + $0x90] sm:$0xff] %vm450, %v436
  %470 = vst.msk [vmem:[#allocation2 + $0x98] sm:$0xff] %vm450, %v437
  %471 = vst.msk [vmem:[#allocation2 + $0xa0] sm:$0xff] %vm450, %v438
  %472 = vst.msk [vmem:[#allocation2 + $0xa8] sm:$0xff] %vm450, %v439
  %473 = vst.msk [vmem:[#allocation2 + $0xb0] sm:$0xff] %vm450, %v440
  %474 = vst.msk [vmem:[#allocation2 + $0xb8] sm:$0xff] %vm450, %v441
  %475 = vst.msk [vmem:[#allocation2 + $0xc0] sm:$0xff] %vm450, %v442
  %476 = vst.msk [vmem:[#allocation2 + $0xc8] sm:$0xff] %vm450, %v443
  %477 = vst.msk [vmem:[#allocation2 + $0xd0] sm:$0xff] %vm450, %v444
  %478 = vst.msk [vmem:[#allocation2 + $0xd8] sm:$0xff] %vm450, %v445
  %479 = vst.msk [vmem:[#allocation2 + $0xe0] sm:$0xff] %vm450, %v446
  %480 = vst.msk [vmem:[#allocation2 + $0xe8] sm:$0xff] %vm450, %v447
  %481 = vst.msk [vmem:[#allocation2 + $0xf0] sm:$0xff] %vm450, %v448
  %482 = vst.msk [vmem:[#allocation2 + $0xf8] sm:$0xff] %vm450, %v449
  // Predicated region
  $region34: #{tpu_custom_call.1} parent=0 // pred_check
    %p483 = pneg %p28
  $region35: #{tpu_custom_call.1} parent=0 // pred_check_branch
    %485 = sbr.rel (%p483) target = $region37
  $region36: #{tpu_custom_call.1} parent=0 // pred_region
    %v486 = vld [vmem:[#allocation2] sm:$0xff]
    %v487 = vld [vmem:[#allocation2 + $0x8] sm:$0xff]
    %v488 = vld [vmem:[#allocation2 + $0x10] sm:$0xff]
    %v489 = vld [vmem:[#allocation2 + $0x18] sm:$0xff]
    %v490 = vld [vmem:[#allocation2 + $0x20] sm:$0xff]
    %v491 = vld [vmem:[#allocation2 + $0x28] sm:$0xff]
    %v492 = vld [vmem:[#allocation2 + $0x30] sm:$0xff]
    %v493 = vld [vmem:[#allocation2 + $0x38] sm:$0xff]
    %v494 = vld [vmem:[#allocation2 + $0x40] sm:$0xff]
    %v495 = vld [vmem:[#allocation2 + $0x48] sm:$0xff]
    %v496 = vld [vmem:[#allocation2 + $0x50] sm:$0xff]
    %v497 = vld [vmem:[#allocation2 + $0x58] sm:$0xff]
    %v498 = vld [vmem:[#allocation2 + $0x60] sm:$0xff]
    %v499 = vld [vmem:[#allocation2 + $0x68] sm:$0xff]
    %v500 = vld [vmem:[#allocation2 + $0x70] sm:$0xff]
    %v501 = vld [vmem:[#allocation2 + $0x78] sm:$0xff]
    %v502 = vld [vmem:[#allocation2 + $0x80] sm:$0xff]
    %v503 = vld [vmem:[#allocation2 + $0x88] sm:$0xff]
    %v504 = vld [vmem:[#allocation2 + $0x90] sm:$0xff]
    %v505 = vld [vmem:[#allocation2 + $0x98] sm:$0xff]
    %v506 = vld [vmem:[#allocation2 + $0xa0] sm:$0xff]
    %v507 = vld [vmem:[#allocation2 + $0xa8] sm:$0xff]
    %v508 = vld [vmem:[#allocation2 + $0xb0] sm:$0xff]
    %v509 = vld [vmem:[#allocation2 + $0xb8] sm:$0xff]
    %v510 = vld [vmem:[#allocation2 + $0xc0] sm:$0xff]
    %v511 = vld [vmem:[#allocation2 + $0xc8] sm:$0xff]
    %v512 = vld [vmem:[#allocation2 + $0xd0] sm:$0xff]
    %v513 = vld [vmem:[#allocation2 + $0xd8] sm:$0xff]
    %v514 = vld [vmem:[#allocation2 + $0xe0] sm:$0xff]
    %v515 = vld [vmem:[#allocation2 + $0xe8] sm:$0xff]
    %v516 = vld [vmem:[#allocation2 + $0xf0] sm:$0xff]
    %v517 = vld [vmem:[#allocation2 + $0xf8] sm:$0xff]
    %v518 = vld [vmem:[%s2] sm:$0xff]
    %v519 = vld [vmem:[%s2 + $0x8] sm:$0xff]
    %v520 = vld [vmem:[%s2 + $0x10] sm:$0xff]
    %v521 = vld [vmem:[%s2 + $0x18] sm:$0xff]
    %v522 = vld [vmem:[%s2 + $0x20] sm:$0xff]
    %v523 = vld [vmem:[%s2 + $0x28] sm:$0xff]
    %v524 = vld [vmem:[%s2 + $0x30] sm:$0xff]
    %v525 = vld [vmem:[%s2 + $0x38] sm:$0xff]
    %v526 = vld [vmem:[%s2 + $0x40] sm:$0xff]
    %v527 = vld [vmem:[%s2 + $0x48] sm:$0xff]
    %v528 = vld [vmem:[%s2 + $0x50] sm:$0xff]
    %v529 = vld [vmem:[%s2 + $0x58] sm:$0xff]
    %v530 = vld [vmem:[%s2 + $0x60] sm:$0xff]
    %v531 = vld [vmem:[%s2 + $0x68] sm:$0xff]
    %v532 = vld [vmem:[%s2 + $0x70] sm:$0xff]
    %v533 = vld [vmem:[%s2 + $0x78] sm:$0xff]
    %v534 = vld [vmem:[%s2 + $0x80] sm:$0xff]
    %v535 = vld [vmem:[%s2 + $0x88] sm:$0xff]
    %v536 = vld [vmem:[%s2 + $0x90] sm:$0xff]
    %v537 = vld [vmem:[%s2 + $0x98] sm:$0xff]
    %v538 = vld [vmem:[%s2 + $0xa0] sm:$0xff]
    %v539 = vld [vmem:[%s2 + $0xa8] sm:$0xff]
    %v540 = vld [vmem:[%s2 + $0xb0] sm:$0xff]
    %v541 = vld [vmem:[%s2 + $0xb8] sm:$0xff]
    %v542 = vld [vmem:[%s2 + $0xc0] sm:$0xff]
    %v543 = vld [vmem:[%s2 + $0xc8] sm:$0xff]
    %v544 = vld [vmem:[%s2 + $0xd0] sm:$0xff]
    %v545 = vld [vmem:[%s2 + $0xd8] sm:$0xff]
    %v546 = vld [vmem:[%s2 + $0xe0] sm:$0xff]
    %v547 = vld [vmem:[%s2 + $0xe8] sm:$0xff]
    %v548 = vld [vmem:[%s2 + $0xf0] sm:$0xff]
    %v549 = vld [vmem:[%s2 + $0xf8] sm:$0xff]
    %v550 = vld [vmem:[%s3] sm:$0xff]
    %v551 = vld [vmem:[%s3 + $0x8] sm:$0xff]
    %v552 = vld [vmem:[%s3 + $0x10] sm:$0xff]
    %v553 = vld [vmem:[%s3 + $0x18] sm:$0xff]
    %v554 = vld [vmem:[%s4] sm:$0x1]
    %v556 = vlaneseq
    %v557 = vshrl.u32 %v556, 7
    %v558 = vsub.s32 0, %v557
    %v559 = vrot.slane %v554, %v558
    %v562 = vsel %vm450, %v486, 0
    %v565 = vsel %vm450, %v487, 0
    %v568 = vsel %vm450, %v488, 0
    %v571 = vsel %vm450, %v489, 0
    %v574 = vsel %vm450, %v490, 0
    %v577 = vsel %vm450, %v491, 0
    %v580 = vsel %vm450, %v492, 0
    %v583 = vsel %vm450, %v493, 0
    %v586 = vsel %vm450, %v494, 0
    %v589 = vsel %vm450, %v495, 0
    %v592 = vsel %vm450, %v496, 0
    %v595 = vsel %vm450, %v497, 0
    %v598 = vsel %vm450, %v498, 0
    %v601 = vsel %vm450, %v499, 0
    %v604 = vsel %vm450, %v500, 0
    %v607 = vsel %vm450, %v501, 0
    %v610 = vsel %vm450, %v502, 0
    %v613 = vsel %vm450, %v503, 0
    %v616 = vsel %vm450, %v504, 0
    %v619 = vsel %vm450, %v505, 0
    %v622 = vsel %vm450, %v506, 0
    %v625 = vsel %vm450, %v507, 0
    %v628 = vsel %vm450, %v508, 0
    %v631 = vsel %vm450, %v509, 0
    %v634 = vsel %vm450, %v510, 0
    %v637 = vsel %vm450, %v511, 0
    %v640 = vsel %vm450, %v512, 0
    %v643 = vsel %vm450, %v513, 0
    %v646 = vsel %vm450, %v514, 0
    %v649 = vsel %vm450, %v515, 0
    %v652 = vsel %vm450, %v516, 0
    %v655 = vsel %vm450, %v517, 0
    %657 = vmatprep.subr.mxu0 0.0
    %658 = vmatpush1.msra.mxu0 0.0
    %659 = vmatprep.subr.mxu0 0.0
    %660 = vmatpush1.msra.mxu0 0.0
    %661 = vmatprep.subr.mxu0 0.0
    %662 = vmatpush1.msra.mxu0 0.0
    %663 = vmatprep.subr.mxu0 0.0
    %664 = vmatpush1.msra.mxu0 0.0
    %665 = vmatprep.subr.mxu0 0.0
    %666 = vmatpush1.msra.mxu0 0.0
    %667 = vmatprep.subr.mxu0 0.0
    %668 = vmatpush1.msra.mxu0 0.0
    %669 = vmatprep.subr.mxu0 0.0
    %670 = vmatpush1.msra.mxu0 0.0
    %671 = vmatprep.subr.mxu0 0.0
    %672 = vmatpush1.msra.mxu0 0.0
    %673 = vmatprep.subr.mxu0 0.0
    %674 = vmatpush1.msra.mxu0 0.0
    %675 = vmatprep.subr.mxu0 0.0
    %676 = vmatpush1.msra.mxu0 0.0
    %677 = vmatprep.subr.mxu0 0.0
    %678 = vmatpush1.msra.mxu0 0.0
    %679 = vmatprep.subr.mxu0 0.0
    %680 = vmatpush1.msra.mxu0 0.0
    %681 = vmatprep.subr.mxu0 0.0
    %682 = vmatpush1.msra.mxu0 %v553
    %683 = vmatprep.subr.mxu0 0.0
    %684 = vmatpush1.msra.mxu0 %v552
    %685 = vmatprep.subr.mxu0 0.0
    %686 = vmatpush1.msra.mxu0 %v551
    %687 = vmatprep.subr.mxu0 0.0
    %688 = vmatpush1.msra.mxu0 %v550
    %689 = vmatprep.subr.mxu0 0.0
    %690 = vmatpush2.msra.mxu0 0.0
    %691 = vmatprep.subr.mxu0 0.0
    %692 = vmatpush2.msra.mxu0 0.0
    %693 = vmatprep.subr.mxu0 0.0
    %694 = vmatpush2.msra.mxu0 0.0
    %695 = vmatprep.subr.mxu0 0.0
    %696 = vmatpush2.msra.mxu0 0.0
    %697 = vmatprep.subr.mxu0 0.0
    %698 = vmatpush2.msra.mxu0 0.0
    %699 = vmatprep.subr.mxu0 0.0
    %700 = vmatpush2.msra.mxu0 0.0
    %701 = vmatprep.subr.mxu0 0.0
    %702 = vmatpush2.msra.mxu0 0.0
    %703 = vmatprep.subr.mxu0 0.0
    %704 = vmatpush2.msra.mxu0 0.0
    %705 = vmatprep.subr.mxu0 0.0
    %706 = vmatpush2.msra.mxu0 0.0
    %707 = vmatprep.subr.mxu0 0.0
    %708 = vmatpush2.msra.mxu0 0.0
    %709 = vmatprep.subr.mxu0 0.0
    %710 = vmatpush2.msra.mxu0 0.0
    %711 = vmatprep.subr.mxu0 0.0
    %712 = vmatpush2.msra.mxu0 0.0
    %713 = vmatprep.subr.mxu0 0.0
    %714 = vmatpush2.msra.mxu0 0.0
    %715 = vmatprep.subr.mxu0 0.0
    %716 = vmatpush2.msra.mxu0 0.0
    %717 = vmatprep.subr.mxu0 0.0
    %718 = vmatpush2.msra.mxu0 0.0
    %719 = vmatprep.subr.mxu0 0.0
    %720 = vmatpush2.msra.mxu0 0.0
    %721 = vmatprep.mubr.f32.mxu0 0.0
    %722 = vmatmul.mubr.f32.gmra.mxu0 %v562
    %v723 = vpop.f32.mrf.mxu0
    %v724 = vadd.f32 %v559, %v723
    %v725 = vpop.f32.mrf.mxu0
    %726 = vmatprep.mubr.f32.mxu0 0.0
    %727 = vmatmul.mubr.f32.gmra.mxu0 %v565
    %v728 = vpop.f32.mrf.mxu0
    %v729 = vadd.f32 %v559, %v728
    %v730 = vpop.f32.mrf.mxu0
    %731 = vmatprep.mubr.f32.mxu0 0.0
    %732 = vmatmul.mubr.f32.gmra.mxu0 %v568
    %v733 = vpop.f32.mrf.mxu0
    %v734 = vadd.f32 %v559, %v733
    %v735 = vpop.f32.mrf.mxu0
    %736 = vmatprep.mubr.f32.mxu0 0.0
    %737 = vmatmul.mubr.f32.gmra.mxu0 %v571
    %v738 = vpop.f32.mrf.mxu0
    %v739 = vadd.f32 %v559, %v738
    %v740 = vpop.f32.mrf.mxu0
    %741 = vmatprep.mubr.f32.mxu0 0.0
    %742 = vmatmul.mubr.f32.gmra.mxu0 %v574
    %v743 = vpop.f32.mrf.mxu0
    %v744 = vadd.f32 %v559, %v743
    %v745 = vpop.f32.mrf.mxu0
    %746 = vmatprep.mubr.f32.mxu0 0.0
    %747 = vmatmul.mubr.f32.gmra.mxu0 %v577
    %v748 = vpop.f32.mrf.mxu0
    %v749 = vadd.f32 %v559, %v748
    %v750 = vpop.f32.mrf.mxu0
    %751 = vmatprep.mubr.f32.mxu0 0.0
    %752 = vmatmul.mubr.f32.gmra.mxu0 %v580
    %v753 = vpop.f32.mrf.mxu0
    %v754 = vadd.f32 %v559, %v753
    %v755 = vpop.f32.mrf.mxu0
    %756 = vmatprep.mubr.f32.mxu0 0.0
    %757 = vmatmul.mubr.f32.gmra.mxu0 %v583
    %v758 = vpop.f32.mrf.mxu0
    %v759 = vadd.f32 %v559, %v758
    %v760 = vpop.f32.mrf.mxu0
    %761 = vmatprep.mubr.f32.mxu0 0.0
    %762 = vmatmul.mubr.f32.gmra.mxu0 %v586
    %v763 = vpop.f32.mrf.mxu0
    %v764 = vadd.f32 %v559, %v763
    %v765 = vpop.f32.mrf.mxu0
    %766 = vmatprep.mubr.f32.mxu0 0.0
    %767 = vmatmul.mubr.f32.gmra.mxu0 %v589
    %v768 = vpop.f32.mrf.mxu0
    %v769 = vadd.f32 %v559, %v768
    %v770 = vpop.f32.mrf.mxu0
    %771 = vmatprep.mubr.f32.mxu0 0.0
    %772 = vmatmul.mubr.f32.gmra.mxu0 %v592
    %v773 = vpop.f32.mrf.mxu0
    %v774 = vadd.f32 %v559, %v773
    %v775 = vpop.f32.mrf.mxu0
    %776 = vmatprep.mubr.f32.mxu0 0.0
    %777 = vmatmul.mubr.f32.gmra.mxu0 %v595
    %v778 = vpop.f32.mrf.mxu0
    %v779 = vadd.f32 %v559, %v778
    %v780 = vpop.f32.mrf.mxu0
    %781 = vmatprep.mubr.f32.mxu0 0.0
    %782 = vmatmul.mubr.f32.gmra.mxu0 %v598
    %v783 = vpop.f32.mrf.mxu0
    %v784 = vadd.f32 %v559, %v783
    %v785 = vpop.f32.mrf.mxu0
    %786 = vmatprep.mubr.f32.mxu0 0.0
    %787 = vmatmul.mubr.f32.gmra.mxu0 %v601
    %v788 = vpop.f32.mrf.mxu0
    %v789 = vadd.f32 %v559, %v788
    %v790 = vpop.f32.mrf.mxu0
    %791 = vmatprep.mubr.f32.mxu0 0.0
    %792 = vmatmul.mubr.f32.gmra.mxu0 %v604
    %v793 = vpop.f32.mrf.mxu0
    %v794 = vadd.f32 %v559, %v793
    %v795 = vpop.f32.mrf.mxu0
    %796 = vmatprep.mubr.f32.mxu0 0.0
    %797 = vmatmul.mubr.f32.gmra.mxu0 %v607
    %v798 = vpop.f32.mrf.mxu0
    %v799 = vadd.f32 %v559, %v798
    %v800 = vpop.f32.mrf.mxu0
    %801 = vmatprep.mubr.f32.mxu0 0.0
    %802 = vmatmul.mubr.f32.gmra.mxu0 %v610
    %v803 = vpop.f32.mrf.mxu0
    %v804 = vadd.f32 %v559, %v803
    %v805 = vpop.f32.mrf.mxu0
    %806 = vmatprep.mubr.f32.mxu0 0.0
    %807 = vmatmul.mubr.f32.gmra.mxu0 %v613
    %v808 = vpop.f32.mrf.mxu0
    %v809 = vadd.f32 %v559, %v808
    %v810 = vpop.f32.mrf.mxu0
    %811 = vmatprep.mubr.f32.mxu0 0.0
    %812 = vmatmul.mubr.f32.gmra.mxu0 %v616
    %v813 = vpop.f32.mrf.mxu0
    %v814 = vadd.f32 %v559, %v813
    %v815 = vpop.f32.mrf.mxu0
    %816 = vmatprep.mubr.f32.mxu0 0.0
    %817 = vmatmul.mubr.f32.gmra.mxu0 %v619
    %v818 = vpop.f32.mrf.mxu0
    %v819 = vadd.f32 %v559, %v818
    %v820 = vpop.f32.mrf.mxu0
    %821 = vmatprep.mubr.f32.mxu0 0.0
    %822 = vmatmul.mubr.f32.gmra.mxu0 %v622
    %v823 = vpop.f32.mrf.mxu0
    %v824 = vadd.f32 %v559, %v823
    %v825 = vpop.f32.mrf.mxu0
    %826 = vmatprep.mubr.f32.mxu0 0.0
    %827 = vmatmul.mubr.f32.gmra.mxu0 %v625
    %v828 = vpop.f32.mrf.mxu0
    %v829 = vadd.f32 %v559, %v828
    %v830 = vpop.f32.mrf.mxu0
    %831 = vmatprep.mubr.f32.mxu0 0.0
    %832 = vmatmul.mubr.f32.gmra.mxu0 %v628
    %v833 = vpop.f32.mrf.mxu0
    %v834 = vadd.f32 %v559, %v833
    %v835 = vpop.f32.mrf.mxu0
    %836 = vmatprep.mubr.f32.mxu0 0.0
    %837 = vmatmul.mubr.f32.gmra.mxu0 %v631
    %v838 = vpop.f32.mrf.mxu0
    %v839 = vadd.f32 %v559, %v838
    %v840 = vpop.f32.mrf.mxu0
    %841 = vmatprep.mubr.f32.mxu0 0.0
    %842 = vmatmul.mubr.f32.gmra.mxu0 %v634
    %v843 = vpop.f32.mrf.mxu0
    %v844 = vadd.f32 %v559, %v843
    %v845 = vpop.f32.mrf.mxu0
    %846 = vmatprep.mubr.f32.mxu0 0.0
    %847 = vmatmul.mubr.f32.gmra.mxu0 %v637
    %v848 = vpop.f32.mrf.mxu0
    %v849 = vadd.f32 %v559, %v848
    %v850 = vpop.f32.mrf.mxu0
    %851 = vmatprep.mubr.f32.mxu0 0.0
    %852 = vmatmul.mubr.f32.gmra.mxu0 %v640
    %v853 = vpop.f32.mrf.mxu0
    %v854 = vadd.f32 %v559, %v853
    %v855 = vpop.f32.mrf.mxu0
    %856 = vmatprep.mubr.f32.mxu0 0.0
    %857 = vmatmul.mubr.f32.gmra.mxu0 %v643
    %v858 = vpop.f32.mrf.mxu0
    %v859 = vadd.f32 %v559, %v858
    %v860 = vpop.f32.mrf.mxu0
    %861 = vmatprep.mubr.f32.mxu0 0.0
    %862 = vmatmul.mubr.f32.gmra.mxu0 %v646
    %v863 = vpop.f32.mrf.mxu0
    %v864 = vadd.f32 %v559, %v863
    %v865 = vpop.f32.mrf.mxu0
    %866 = vmatprep.mubr.f32.mxu0 0.0
    %867 = vmatmul.mubr.f32.gmra.mxu0 %v649
    %v868 = vpop.f32.mrf.mxu0
    %v869 = vadd.f32 %v559, %v868
    %v870 = vpop.f32.mrf.mxu0
    %871 = vmatprep.mubr.f32.mxu0 0.0
    %872 = vmatmul.mubr.f32.gmra.mxu0 %v652
    %v873 = vpop.f32.mrf.mxu0
    %v874 = vadd.f32 %v559, %v873
    %v875 = vpop.f32.mrf.mxu0
    %876 = vmatprep.mubr.f32.mxu0 0.0
    %877 = vmatmul.mubr.f32.gmra.mxu0 %v655
    %v878 = vpop.f32.mrf.mxu0
    %v879 = vadd.f32 %v559, %v878
    %v880 = vpop.f32.mrf.mxu0
    %881 = vdwg.mxu0
    %vm882 = vcmp.ge.f32.partialorder %v724, 0.0
    %vm883 = vcmp.ge.f32.partialorder %v729, 0.0
    %vm884 = vcmp.ge.f32.partialorder %v734, 0.0
    %vm885 = vcmp.ge.f32.partialorder %v739, 0.0
    %vm886 = vcmp.ge.f32.partialorder %v744, 0.0
    %vm887 = vcmp.ge.f32.partialorder %v749, 0.0
    %vm888 = vcmp.ge.f32.partialorder %v754, 0.0
    %vm889 = vcmp.ge.f32.partialorder %v759, 0.0
    %vm890 = vcmp.ge.f32.partialorder %v764, 0.0
    %vm891 = vcmp.ge.f32.partialorder %v769, 0.0
    %vm892 = vcmp.ge.f32.partialorder %v774, 0.0
    %vm893 = vcmp.ge.f32.partialorder %v779, 0.0
    %vm894 = vcmp.ge.f32.partialorder %v784, 0.0
    %vm895 = vcmp.ge.f32.partialorder %v789, 0.0
    %vm896 = vcmp.ge.f32.partialorder %v794, 0.0
    %vm897 = vcmp.ge.f32.partialorder %v799, 0.0
    %vm898 = vcmp.ge.f32.partialorder %v804, 0.0
    %vm899 = vcmp.ge.f32.partialorder %v809, 0.0
    %vm900 = vcmp.ge.f32.partialorder %v814, 0.0
    %vm901 = vcmp.ge.f32.partialorder %v819, 0.0
    %vm902 = vcmp.ge.f32.partialorder %v824, 0.0
    %vm903 = vcmp.ge.f32.partialorder %v829, 0.0
    %vm904 = vcmp.ge.f32.partialorder %v834, 0.0
    %vm905 = vcmp.ge.f32.partialorder %v839, 0.0
    %vm906 = vcmp.ge.f32.partialorder %v844, 0.0
    %vm907 = vcmp.ge.f32.partialorder %v849, 0.0
    %vm908 = vcmp.ge.f32.partialorder %v854, 0.0
    %vm909 = vcmp.ge.f32.partialorder %v859, 0.0
    %vm910 = vcmp.ge.f32.partialorder %v864, 0.0
    %vm911 = vcmp.ge.f32.partialorder %v869, 0.0
    %vm912 = vcmp.ge.f32.partialorder %v874, 0.0
    %vm913 = vcmp.ge.f32.partialorder %v879, 0.0
    %v914 = vmul.f32 %v724, 0.01
    %v915 = vmul.f32 %v729, 0.01
    %v916 = vmul.f32 %v734, 0.01
    %v917 = vmul.f32 %v739, 0.01
    %v918 = vmul.f32 %v744, 0.01
    %v919 = vmul.f32 %v749, 0.01
    %v920 = vmul.f32 %v754, 0.01
    %v921 = vmul.f32 %v759, 0.01
    %v922 = vmul.f32 %v764, 0.01
    %v923 = vmul.f32 %v769, 0.01
    %v924 = vmul.f32 %v774, 0.01
    %v925 = vmul.f32 %v779, 0.01
    %v926 = vmul.f32 %v784, 0.01
    %v927 = vmul.f32 %v789, 0.01
    %v928 = vmul.f32 %v794, 0.01
    %v929 = vmul.f32 %v799, 0.01
    %v930 = vmul.f32 %v804, 0.01
    %v931 = vmul.f32 %v809, 0.01
    %v932 = vmul.f32 %v814, 0.01
    %v933 = vmul.f32 %v819, 0.01
    %v934 = vmul.f32 %v824, 0.01
    %v935 = vmul.f32 %v829, 0.01
    %v936 = vmul.f32 %v834, 0.01
    %v937 = vmul.f32 %v839, 0.01
    %v938 = vmul.f32 %v844, 0.01
    %v939 = vmul.f32 %v849, 0.01
    %v940 = vmul.f32 %v854, 0.01
    %v941 = vmul.f32 %v859, 0.01
    %v942 = vmul.f32 %v864, 0.01
    %v943 = vmul.f32 %v869, 0.01
    %v944 = vmul.f32 %v874, 0.01
    %v945 = vmul.f32 %v879, 0.01
    %v946 = vsel %vm882, %v724, %v914
    %v947 = vsel %vm883, %v729, %v915
    %v948 = vsel %vm884, %v734, %v916
    %v949 = vsel %vm885, %v739, %v917
    %v950 = vsel %vm886, %v744, %v918
    %v951 = vsel %vm887, %v749, %v919
    %v952 = vsel %vm888, %v754, %v920
    %v953 = vsel %vm889, %v759, %v921
    %v954 = vsel %vm890, %v764, %v922
    %v955 = vsel %vm891, %v769, %v923
    %v956 = vsel %vm892, %v774, %v924
    %v957 = vsel %vm893, %v779, %v925
    %v958 = vsel %vm894, %v784, %v926
    %v959 = vsel %vm895, %v789, %v927
    %v960 = vsel %vm896, %v794, %v928
    %v961 = vsel %vm897, %v799, %v929
    %v962 = vsel %vm898, %v804, %v930
    %v963 = vsel %vm899, %v809, %v931
    %v964 = vsel %vm900, %v814, %v932
    %v965 = vsel %vm901, %v819, %v933
    %v966 = vsel %vm902, %v824, %v934
    %v967 = vsel %vm903, %v829, %v935
    %v968 = vsel %vm904, %v834, %v936
    %v969 = vsel %vm905, %v839, %v937
    %v970 = vsel %vm906, %v844, %v938
    %v971 = vsel %vm907, %v849, %v939
    %v972 = vsel %vm908, %v854, %v940
    %v973 = vsel %vm909, %v859, %v941
    %v974 = vsel %vm910, %v864, %v942
    %v975 = vsel %vm911, %v869, %v943
    %v976 = vsel %vm912, %v874, %v944
    %v977 = vsel %vm913, %v879, %v945
    %v978 = vmul.f32 %v518, %v486
    %v979 = vmul.f32 %v519, %v487
    %v980 = vmul.f32 %v520, %v488
    %v981 = vmul.f32 %v521, %v489
    %v982 = vmul.f32 %v522, %v490
    %v983 = vmul.f32 %v523, %v491
    %v984 = vmul.f32 %v524, %v492
    %v985 = vmul.f32 %v525, %v493
    %v986 = vmul.f32 %v526, %v494
    %v987 = vmul.f32 %v527, %v495
    %v988 = vmul.f32 %v528, %v496
    %v989 = vmul.f32 %v529, %v497
    %v990 = vmul.f32 %v530, %v498
    %v991 = vmul.f32 %v531, %v499
    %v992 = vmul.f32 %v532, %v500
    %v993 = vmul.f32 %v533, %v501
    %v994 = vmul.f32 %v534, %v502
    %v995 = vmul.f32 %v535, %v503
    %v996 = vmul.f32 %v536, %v504
    %v997 = vmul.f32 %v537, %v505
    %v998 = vmul.f32 %v538, %v506
    %v999 = vmul.f32 %v539, %v507
    %v1000 = vmul.f32 %v540, %v508
    %v1001 = vmul.f32 %v541, %v509
    %v1002 = vmul.f32 %v542, %v510
    %v1003 = vmul.f32 %v543, %v511
    %v1004 = vmul.f32 %v544, %v512
    %v1005 = vmul.f32 %v545, %v513
    %v1006 = vmul.f32 %v546, %v514
    %v1007 = vmul.f32 %v547, %v515
    %v1008 = vmul.f32 %v548, %v516
    %v1009 = vmul.f32 %v549, %v517
    %v1010 = vld [vmem:[%s5] sm:$0xff]
    %v1011 = vld [vmem:[%s5 + $0x8] sm:$0xff]
    %v1012 = vld [vmem:[%s5 + $0x10] sm:$0xff]
    %v1013 = vld [vmem:[%s5 + $0x18] sm:$0xff]
    %v1014 = vld [vmem:[%s6] sm:$0x1]
    %v1016 = vlaneseq
    %v1017 = vshrl.u32 %v1016, 7
    %v1018 = vsub.s32 0, %v1017
    %v1019 = vrot.slane %v1014, %v1018
    %v1022 = vsel %vm450, %v978, 0
    %v1025 = vsel %vm450, %v979, 0
    %v1028 = vsel %vm450, %v980, 0
    %v1031 = vsel %vm450, %v981, 0
    %v1034 = vsel %vm450, %v982, 0
    %v1037 = vsel %vm450, %v983, 0
    %v1040 = vsel %vm450, %v984, 0
    %v1043 = vsel %vm450, %v985, 0
    %v1046 = vsel %vm450, %v986, 0
    %v1049 = vsel %vm450, %v987, 0
    %v1052 = vsel %vm450, %v988, 0
    %v1055 = vsel %vm450, %v989, 0
    %v1058 = vsel %vm450, %v990, 0
    %v1061 = vsel %vm450, %v991, 0
    %v1064 = vsel %vm450, %v992, 0
    %v1067 = vsel %vm450, %v993, 0
    %v1070 = vsel %vm450, %v994, 0
    %v1073 = vsel %vm450, %v995, 0
    %v1076 = vsel %vm450, %v996, 0
    %v1079 = vsel %vm450, %v997, 0
    %v1082 = vsel %vm450, %v998, 0
    %v1085 = vsel %vm450, %v999, 0
    %v1088 = vsel %vm450, %v1000, 0
    %v1091 = vsel %vm450, %v1001, 0
    %v1094 = vsel %vm450, %v1002, 0
    %v1097 = vsel %vm450, %v1003, 0
    %v1100 = vsel %vm450, %v1004, 0
    %v1103 = vsel %vm450, %v1005, 0
    %v1106 = vsel %vm450, %v1006, 0
    %v1109 = vsel %vm450, %v1007, 0
    %v1112 = vsel %vm450, %v1008, 0
    %v1115 = vsel %vm450, %v1009, 0
    %1117 = vmatprep.subr.mxu0 0.0
    %1118 = vmatpush1.msra.mxu0 0.0
    %1119 = vmatprep.subr.mxu0 0.0
    %1120 = vmatpush1.msra.mxu0 0.0
    %1121 = vmatprep.subr.mxu0 0.0
    %1122 = vmatpush1.msra.mxu0 0.0
    %1123 = vmatprep.subr.mxu0 0.0
    %1124 = vmatpush1.msra.mxu0 0.0
    %1125 = vmatprep.subr.mxu0 0.0
    %1126 = vmatpush1.msra.mxu0 0.0
    %1127 = vmatprep.subr.mxu0 0.0
    %1128 = vmatpush1.msra.mxu0 0.0
    %1129 = vmatprep.subr.mxu0 0.0
    %1130 = vmatpush1.msra.mxu0 0.0
    %1131 = vmatprep.subr.mxu0 0.0
    %1132 = vmatpush1.msra.mxu0 0.0
    %1133 = vmatprep.subr.mxu0 0.0
    %1134 = vmatpush1.msra.mxu0 0.0
    %1135 = vmatprep.subr.mxu0 0.0
    %1136 = vmatpush1.msra.mxu0 0.0
    %1137 = vmatprep.subr.mxu0 0.0
    %1138 = vmatpush1.msra.mxu0 0.0
    %1139 = vmatprep.subr.mxu0 0.0
    %1140 = vmatpush1.msra.mxu0 0.0
    %1141 = vmatprep.subr.mxu0 0.0
    %1142 = vmatpush1.msra.mxu0 %v1013
    %1143 = vmatprep.subr.mxu0 0.0
    %1144 = vmatpush1.msra.mxu0 %v1012
    %1145 = vmatprep.subr.mxu0 0.0
    %1146 = vmatpush1.msra.mxu0 %v1011
    %1147 = vmatprep.subr.mxu0 0.0
    %1148 = vmatpush1.msra.mxu0 %v1010
    %1149 = vmatprep.subr.mxu0 0.0
    %1150 = vmatpush2.msra.mxu0 0.0
    %1151 = vmatprep.subr.mxu0 0.0
    %1152 = vmatpush2.msra.mxu0 0.0
    %1153 = vmatprep.subr.mxu0 0.0
    %1154 = vmatpush2.msra.mxu0 0.0
    %1155 = vmatprep.subr.mxu0 0.0
    %1156 = vmatpush2.msra.mxu0 0.0
    %1157 = vmatprep.subr.mxu0 0.0
    %1158 = vmatpush2.msra.mxu0 0.0
    %1159 = vmatprep.subr.mxu0 0.0
    %1160 = vmatpush2.msra.mxu0 0.0
    %1161 = vmatprep.subr.mxu0 0.0
    %1162 = vmatpush2.msra.mxu0 0.0
    %1163 = vmatprep.subr.mxu0 0.0
    %1164 = vmatpush2.msra.mxu0 0.0
    %1165 = vmatprep.subr.mxu0 0.0
    %1166 = vmatpush2.msra.mxu0 0.0
    %1167 = vmatprep.subr.mxu0 0.0
    %1168 = vmatpush2.msra.mxu0 0.0
    %1169 = vmatprep.subr.mxu0 0.0
    %1170 = vmatpush2.msra.mxu0 0.0
    %1171 = vmatprep.subr.mxu0 0.0
    %1172 = vmatpush2.msra.mxu0 0.0
    %1173 = vmatprep.subr.mxu0 0.0
    %1174 = vmatpush2.msra.mxu0 0.0
    %1175 = vmatprep.subr.mxu0 0.0
    %1176 = vmatpush2.msra.mxu0 0.0
    %1177 = vmatprep.subr.mxu0 0.0
    %1178 = vmatpush2.msra.mxu0 0.0
    %1179 = vmatprep.subr.mxu0 0.0
    %1180 = vmatpush2.msra.mxu0 0.0
    %1181 = vmatprep.mubr.f32.mxu0 0.0
    %1182 = vmatmul.mubr.f32.gmra.mxu0 %v1022
    %v1183 = vpop.f32.mrf.mxu0
    %v1184 = vadd.f32 %v1019, %v1183
    %v1185 = vpop.f32.mrf.mxu0
    %1186 = vmatprep.mubr.f32.mxu0 0.0
    %1187 = vmatmul.mubr.f32.gmra.mxu0 %v1025
    %v1188 = vpop.f32.mrf.mxu0
    %v1189 = vadd.f32 %v1019, %v1188
    %v1190 = vpop.f32.mrf.mxu0
    %1191 = vmatprep.mubr.f32.mxu0 0.0
    %1192 = vmatmul.mubr.f32.gmra.mxu0 %v1028
    %v1193 = vpop.f32.mrf.mxu0
    %v1194 = vadd.f32 %v1019, %v1193
    %v1195 = vpop.f32.mrf.mxu0
    %1196 = vmatprep.mubr.f32.mxu0 0.0
    %1197 = vmatmul.mubr.f32.gmra.mxu0 %v1031
    %v1198 = vpop.f32.mrf.mxu0
    %v1199 = vadd.f32 %v1019, %v1198
    %v1200 = vpop.f32.mrf.mxu0
    %1201 = vmatprep.mubr.f32.mxu0 0.0
    %1202 = vmatmul.mubr.f32.gmra.mxu0 %v1034
    %v1203 = vpop.f32.mrf.mxu0
    %v1204 = vadd.f32 %v1019, %v1203
    %v1205 = vpop.f32.mrf.mxu0
    %1206 = vmatprep.mubr.f32.mxu0 0.0
    %1207 = vmatmul.mubr.f32.gmra.mxu0 %v1037
    %v1208 = vpop.f32.mrf.mxu0
    %v1209 = vadd.f32 %v1019, %v1208
    %v1210 = vpop.f32.mrf.mxu0
    %1211 = vmatprep.mubr.f32.mxu0 0.0
    %1212 = vmatmul.mubr.f32.gmra.mxu0 %v1040
    %v1213 = vpop.f32.mrf.mxu0
    %v1214 = vadd.f32 %v1019, %v1213
    %v1215 = vpop.f32.mrf.mxu0
    %1216 = vmatprep.mubr.f32.mxu0 0.0
    %1217 = vmatmul.mubr.f32.gmra.mxu0 %v1043
    %v1218 = vpop.f32.mrf.mxu0
    %v1219 = vadd.f32 %v1019, %v1218
    %v1220 = vpop.f32.mrf.mxu0
    %1221 = vmatprep.mubr.f32.mxu0 0.0
    %1222 = vmatmul.mubr.f32.gmra.mxu0 %v1046
    %v1223 = vpop.f32.mrf.mxu0
    %v1224 = vadd.f32 %v1019, %v1223
    %v1225 = vpop.f32.mrf.mxu0
    %1226 = vmatprep.mubr.f32.mxu0 0.0
    %1227 = vmatmul.mubr.f32.gmra.mxu0 %v1049
    %v1228 = vpop.f32.mrf.mxu0
    %v1229 = vadd.f32 %v1019, %v1228
    %v1230 = vpop.f32.mrf.mxu0
    %1231 = vmatprep.mubr.f32.mxu0 0.0
    %1232 = vmatmul.mubr.f32.gmra.mxu0 %v1052
    %v1233 = vpop.f32.mrf.mxu0
    %v1234 = vadd.f32 %v1019, %v1233
    %v1235 = vpop.f32.mrf.mxu0
    %1236 = vmatprep.mubr.f32.mxu0 0.0
    %1237 = vmatmul.mubr.f32.gmra.mxu0 %v1055
    %v1238 = vpop.f32.mrf.mxu0
    %v1239 = vadd.f32 %v1019, %v1238
    %v1240 = vpop.f32.mrf.mxu0
    %1241 = vmatprep.mubr.f32.mxu0 0.0
    %1242 = vmatmul.mubr.f32.gmra.mxu0 %v1058
    %v1243 = vpop.f32.mrf.mxu0
    %v1244 = vadd.f32 %v1019, %v1243
    %v1245 = vpop.f32.mrf.mxu0
    %1246 = vmatprep.mubr.f32.mxu0 0.0
    %1247 = vmatmul.mubr.f32.gmra.mxu0 %v1061
    %v1248 = vpop.f32.mrf.mxu0
    %v1249 = vadd.f32 %v1019, %v1248
    %v1250 = vpop.f32.mrf.mxu0
    %1251 = vmatprep.mubr.f32.mxu0 0.0
    %1252 = vmatmul.mubr.f32.gmra.mxu0 %v1064
    %v1253 = vpop.f32.mrf.mxu0
    %v1254 = vadd.f32 %v1019, %v1253
    %v1255 = vpop.f32.mrf.mxu0
    %1256 = vmatprep.mubr.f32.mxu0 0.0
    %1257 = vmatmul.mubr.f32.gmra.mxu0 %v1067
    %v1258 = vpop.f32.mrf.mxu0
    %v1259 = vadd.f32 %v1019, %v1258
    %v1260 = vpop.f32.mrf.mxu0
    %1261 = vmatprep.mubr.f32.mxu0 0.0
    %1262 = vmatmul.mubr.f32.gmra.mxu0 %v1070
    %v1263 = vpop.f32.mrf.mxu0
    %v1264 = vadd.f32 %v1019, %v1263
    %v1265 = vpop.f32.mrf.mxu0
    %1266 = vmatprep.mubr.f32.mxu0 0.0
    %1267 = vmatmul.mubr.f32.gmra.mxu0 %v1073
    %v1268 = vpop.f32.mrf.mxu0
    %v1269 = vadd.f32 %v1019, %v1268
    %v1270 = vpop.f32.mrf.mxu0
    %1271 = vmatprep.mubr.f32.mxu0 0.0
    %1272 = vmatmul.mubr.f32.gmra.mxu0 %v1076
    %v1273 = vpop.f32.mrf.mxu0
    %v1274 = vadd.f32 %v1019, %v1273
    %v1275 = vpop.f32.mrf.mxu0
    %1276 = vmatprep.mubr.f32.mxu0 0.0
    %1277 = vmatmul.mubr.f32.gmra.mxu0 %v1079
    %v1278 = vpop.f32.mrf.mxu0
    %v1279 = vadd.f32 %v1019, %v1278
    %v1280 = vpop.f32.mrf.mxu0
    %1281 = vmatprep.mubr.f32.mxu0 0.0
    %1282 = vmatmul.mubr.f32.gmra.mxu0 %v1082
    %v1283 = vpop.f32.mrf.mxu0
    %v1284 = vadd.f32 %v1019, %v1283
    %v1285 = vpop.f32.mrf.mxu0
    %1286 = vmatprep.mubr.f32.mxu0 0.0
    %1287 = vmatmul.mubr.f32.gmra.mxu0 %v1085
    %v1288 = vpop.f32.mrf.mxu0
    %v1289 = vadd.f32 %v1019, %v1288
    %v1290 = vpop.f32.mrf.mxu0
    %1291 = vmatprep.mubr.f32.mxu0 0.0
    %1292 = vmatmul.mubr.f32.gmra.mxu0 %v1088
    %v1293 = vpop.f32.mrf.mxu0
    %v1294 = vadd.f32 %v1019, %v1293
    %v1295 = vpop.f32.mrf.mxu0
    %1296 = vmatprep.mubr.f32.mxu0 0.0
    %1297 = vmatmul.mubr.f32.gmra.mxu0 %v1091
    %v1298 = vpop.f32.mrf.mxu0
    %v1299 = vadd.f32 %v1019, %v1298
    %v1300 = vpop.f32.mrf.mxu0
    %1301 = vmatprep.mubr.f32.mxu0 0.0
    %1302 = vmatmul.mubr.f32.gmra.mxu0 %v1094
    %v1303 = vpop.f32.mrf.mxu0
    %v1304 = vadd.f32 %v1019, %v1303
    %v1305 = vpop.f32.mrf.mxu0
    %1306 = vmatprep.mubr.f32.mxu0 0.0
    %1307 = vmatmul.mubr.f32.gmra.mxu0 %v1097
    %v1308 = vpop.f32.mrf.mxu0
    %v1309 = vadd.f32 %v1019, %v1308
    %v1310 = vpop.f32.mrf.mxu0
    %1311 = vmatprep.mubr.f32.mxu0 0.0
    %1312 = vmatmul.mubr.f32.gmra.mxu0 %v1100
    %v1313 = vpop.f32.mrf.mxu0
    %v1314 = vadd.f32 %v1019, %v1313
    %v1315 = vpop.f32.mrf.mxu0
    %1316 = vmatprep.mubr.f32.mxu0 0.0
    %1317 = vmatmul.mubr.f32.gmra.mxu0 %v1103
    %v1318 = vpop.f32.mrf.mxu0
    %v1319 = vadd.f32 %v1019, %v1318
    %v1320 = vpop.f32.mrf.mxu0
    %1321 = vmatprep.mubr.f32.mxu0 0.0
    %1322 = vmatmul.mubr.f32.gmra.mxu0 %v1106
    %v1323 = vpop.f32.mrf.mxu0
    %v1324 = vadd.f32 %v1019, %v1323
    %v1325 = vpop.f32.mrf.mxu0
    %1326 = vmatprep.mubr.f32.mxu0 0.0
    %1327 = vmatmul.mubr.f32.gmra.mxu0 %v1109
    %v1328 = vpop.f32.mrf.mxu0
    %v1329 = vadd.f32 %v1019, %v1328
    %v1330 = vpop.f32.mrf.mxu0
    %1331 = vmatprep.mubr.f32.mxu0 0.0
    %1332 = vmatmul.mubr.f32.gmra.mxu0 %v1112
    %v1333 = vpop.f32.mrf.mxu0
    %v1334 = vadd.f32 %v1019, %v1333
    %v1335 = vpop.f32.mrf.mxu0
    %1336 = vmatprep.mubr.f32.mxu0 0.0
    %1337 = vmatmul.mubr.f32.gmra.mxu0 %v1115
    %v1338 = vpop.f32.mrf.mxu0
    %v1339 = vadd.f32 %v1019, %v1338
    %v1340 = vpop.f32.mrf.mxu0
    %1341 = vdwg.mxu0
    %vm1342 = vcmp.ge.f32.partialorder %v1184, 0.0
    %vm1343 = vcmp.ge.f32.partialorder %v1189, 0.0
    %vm1344 = vcmp.ge.f32.partialorder %v1194, 0.0
    %vm1345 = vcmp.ge.f32.partialorder %v1199, 0.0
    %vm1346 = vcmp.ge.f32.partialorder %v1204, 0.0
    %vm1347 = vcmp.ge.f32.partialorder %v1209, 0.0
    %vm1348 = vcmp.ge.f32.partialorder %v1214, 0.0
    %vm1349 = vcmp.ge.f32.partialorder %v1219, 0.0
    %vm1350 = vcmp.ge.f32.partialorder %v1224, 0.0
    %vm1351 = vcmp.ge.f32.partialorder %v1229, 0.0
    %vm1352 = vcmp.ge.f32.partialorder %v1234, 0.0
    %vm1353 = vcmp.ge.f32.partialorder %v1239, 0.0
    %vm1354 = vcmp.ge.f32.partialorder %v1244, 0.0
    %vm1355 = vcmp.ge.f32.partialorder %v1249, 0.0
    %vm1356 = vcmp.ge.f32.partialorder %v1254, 0.0
    %vm1357 = vcmp.ge.f32.partialorder %v1259, 0.0
    %vm1358 = vcmp.ge.f32.partialorder %v1264, 0.0
    %vm1359 = vcmp.ge.f32.partialorder %v1269, 0.0
    %vm1360 = vcmp.ge.f32.partialorder %v1274, 0.0
    %vm1361 = vcmp.ge.f32.partialorder %v1279, 0.0
    %vm1362 = vcmp.ge.f32.partialorder %v1284, 0.0
    %vm1363 = vcmp.ge.f32.partialorder %v1289, 0.0
    %vm1364 = vcmp.ge.f32.partialorder %v1294, 0.0
    %vm1365 = vcmp.ge.f32.partialorder %v1299, 0.0
    %vm1366 = vcmp.ge.f32.partialorder %v1304, 0.0
    %vm1367 = vcmp.ge.f32.partialorder %v1309, 0.0
    %vm1368 = vcmp.ge.f32.partialorder %v1314, 0.0
    %vm1369 = vcmp.ge.f32.partialorder %v1319, 0.0
    %vm1370 = vcmp.ge.f32.partialorder %v1324, 0.0
    %vm1371 = vcmp.ge.f32.partialorder %v1329, 0.0
    %vm1372 = vcmp.ge.f32.partialorder %v1334, 0.0
    %vm1373 = vcmp.ge.f32.partialorder %v1339, 0.0
    %v1374 = vmul.f32 %v1184, 0.01
    %v1375 = vmul.f32 %v1189, 0.01
    %v1376 = vmul.f32 %v1194, 0.01
    %v1377 = vmul.f32 %v1199, 0.01
    %v1378 = vmul.f32 %v1204, 0.01
    %v1379 = vmul.f32 %v1209, 0.01
    %v1380 = vmul.f32 %v1214, 0.01
    %v1381 = vmul.f32 %v1219, 0.01
    %v1382 = vmul.f32 %v1224, 0.01
    %v1383 = vmul.f32 %v1229, 0.01
    %v1384 = vmul.f32 %v1234, 0.01
    %v1385 = vmul.f32 %v1239, 0.01
    %v1386 = vmul.f32 %v1244, 0.01
    %v1387 = vmul.f32 %v1249, 0.01
    %v1388 = vmul.f32 %v1254, 0.01
    %v1389 = vmul.f32 %v1259, 0.01
    %v1390 = vmul.f32 %v1264, 0.01
    %v1391 = vmul.f32 %v1269, 0.01
    %v1392 = vmul.f32 %v1274, 0.01
    %v1393 = vmul.f32 %v1279, 0.01
    %v1394 = vmul.f32 %v1284, 0.01
    %v1395 = vmul.f32 %v1289, 0.01
    %v1396 = vmul.f32 %v1294, 0.01
    %v1397 = vmul.f32 %v1299, 0.01
    %v1398 = vmul.f32 %v1304, 0.01
    %v1399 = vmul.f32 %v1309, 0.01
    %v1400 = vmul.f32 %v1314, 0.01
    %v1401 = vmul.f32 %v1319, 0.01
    %v1402 = vmul.f32 %v1324, 0.01
    %v1403 = vmul.f32 %v1329, 0.01
    %v1404 = vmul.f32 %v1334, 0.01
    %v1405 = vmul.f32 %v1339, 0.01
    %v1406 = vsel %vm1342, %v1184, %v1374
    %v1407 = vsel %vm1343, %v1189, %v1375
    %v1408 = vsel %vm1344, %v1194, %v1376
    %v1409 = vsel %vm1345, %v1199, %v1377
    %v1410 = vsel %vm1346, %v1204, %v1378
    %v1411 = vsel %vm1347, %v1209, %v1379
    %v1412 = vsel %vm1348, %v1214, %v1380
    %v1413 = vsel %vm1349, %v1219, %v1381
    %v1414 = vsel %vm1350, %v1224, %v1382
    %v1415 = vsel %vm1351, %v1229, %v1383
    %v1416 = vsel %vm1352, %v1234, %v1384
    %v1417 = vsel %vm1353, %v1239, %v1385
    %v1418 = vsel %vm1354, %v1244, %v1386
    %v1419 = vsel %vm1355, %v1249, %v1387
    %v1420 = vsel %vm1356, %v1254, %v1388
    %v1421 = vsel %vm1357, %v1259, %v1389
    %v1422 = vsel %vm1358, %v1264, %v1390
    %v1423 = vsel %vm1359, %v1269, %v1391
    %v1424 = vsel %vm1360, %v1274, %v1392
    %v1425 = vsel %vm1361, %v1279, %v1393
    %v1426 = vsel %vm1362, %v1284, %v1394
    %v1427 = vsel %vm1363, %v1289, %v1395
    %v1428 = vsel %vm1364, %v1294, %v1396
    %v1429 = vsel %vm1365, %v1299, %v1397
    %v1430 = vsel %vm1366, %v1304, %v1398
    %v1431 = vsel %vm1367, %v1309, %v1399
    %v1432 = vsel %vm1368, %v1314, %v1400
    %v1433 = vsel %vm1369, %v1319, %v1401
    %v1434 = vsel %vm1370, %v1324, %v1402
    %v1435 = vsel %vm1371, %v1329, %v1403
    %v1436 = vsel %vm1372, %v1334, %v1404
    %v1437 = vsel %vm1373, %v1339, %v1405
    %v1438 = vadd.f32 %v946, %v1406
    %v1439 = vadd.f32 %v947, %v1407
    %v1440 = vadd.f32 %v948, %v1408
    %v1441 = vadd.f32 %v949, %v1409
    %v1442 = vadd.f32 %v950, %v1410
    %v1443 = vadd.f32 %v951, %v1411
    %v1444 = vadd.f32 %v952, %v1412
    %v1445 = vadd.f32 %v953, %v1413
    %v1446 = vadd.f32 %v954, %v1414
    %v1447 = vadd.f32 %v955, %v1415
    %v1448 = vadd.f32 %v956, %v1416
    %v1449 = vadd.f32 %v957, %v1417
    %v1450 = vadd.f32 %v958, %v1418
    %v1451 = vadd.f32 %v959, %v1419
    %v1452 = vadd.f32 %v960, %v1420
    %v1453 = vadd.f32 %v961, %v1421
    %v1454 = vadd.f32 %v962, %v1422
    %v1455 = vadd.f32 %v963, %v1423
    %v1456 = vadd.f32 %v964, %v1424
    %v1457 = vadd.f32 %v965, %v1425
    %v1458 = vadd.f32 %v966, %v1426
    %v1459 = vadd.f32 %v967, %v1427
    %v1460 = vadd.f32 %v968, %v1428
    %v1461 = vadd.f32 %v969, %v1429
    %v1462 = vadd.f32 %v970, %v1430
    %v1463 = vadd.f32 %v971, %v1431
    %v1464 = vadd.f32 %v972, %v1432
    %v1465 = vadd.f32 %v973, %v1433
    %v1466 = vadd.f32 %v974, %v1434
    %v1467 = vadd.f32 %v975, %v1435
    %v1468 = vadd.f32 %v976, %v1436
    %v1469 = vadd.f32 %v977, %v1437
    %v1470 = vmul.f32 %v1438, %v1438
    %v1471 = vmul.f32 %v1439, %v1439
    %v1472 = vmul.f32 %v1440, %v1440
    %v1473 = vmul.f32 %v1441, %v1441
    %v1474 = vmul.f32 %v1442, %v1442
    %v1475 = vmul.f32 %v1443, %v1443
    %v1476 = vmul.f32 %v1444, %v1444
    %v1477 = vmul.f32 %v1445, %v1445
    %v1478 = vmul.f32 %v1446, %v1446
    %v1479 = vmul.f32 %v1447, %v1447
    %v1480 = vmul.f32 %v1448, %v1448
    %v1481 = vmul.f32 %v1449, %v1449
    %v1482 = vmul.f32 %v1450, %v1450
    %v1483 = vmul.f32 %v1451, %v1451
    %v1484 = vmul.f32 %v1452, %v1452
    %v1485 = vmul.f32 %v1453, %v1453
    %v1486 = vmul.f32 %v1454, %v1454
    %v1487 = vmul.f32 %v1455, %v1455
    %v1488 = vmul.f32 %v1456, %v1456
    %v1489 = vmul.f32 %v1457, %v1457
    %v1490 = vmul.f32 %v1458, %v1458
    %v1491 = vmul.f32 %v1459, %v1459
    %v1492 = vmul.f32 %v1460, %v1460
    %v1493 = vmul.f32 %v1461, %v1461
    %v1494 = vmul.f32 %v1462, %v1462
    %v1495 = vmul.f32 %v1463, %v1463
    %v1496 = vmul.f32 %v1464, %v1464
    %v1497 = vmul.f32 %v1465, %v1465
    %v1498 = vmul.f32 %v1466, %v1466
    %v1499 = vmul.f32 %v1467, %v1467
    %v1500 = vmul.f32 %v1468, %v1468
    %v1501 = vmul.f32 %v1469, %v1469
    %v1502 = vsel %vm450, %v1470, 0.0
    %1503 = vadd.xlane.f32.xlu0 %v1502
    %v1504 = vpop.xlane.xlu0 %1503
    %v1505 = vsel %vm450, %v1471, 0.0
    %1506 = vadd.xlane.f32.xlu0 %v1505
    %v1507 = vpop.xlane.xlu0 %1506
    %v1508 = vsel %vm450, %v1472, 0.0
    %1509 = vadd.xlane.f32.xlu0 %v1508
    %v1510 = vpop.xlane.xlu0 %1509
    %v1511 = vsel %vm450, %v1473, 0.0
    %1512 = vadd.xlane.f32.xlu0 %v1511
    %v1513 = vpop.xlane.xlu0 %1512
    %v1514 = vsel %vm450, %v1474, 0.0
    %1515 = vadd.xlane.f32.xlu0 %v1514
    %v1516 = vpop.xlane.xlu0 %1515
    %v1517 = vsel %vm450, %v1475, 0.0
    %1518 = vadd.xlane.f32.xlu0 %v1517
    %v1519 = vpop.xlane.xlu0 %1518
    %v1520 = vsel %vm450, %v1476, 0.0
    %1521 = vadd.xlane.f32.xlu0 %v1520
    %v1522 = vpop.xlane.xlu0 %1521
    %v1523 = vsel %vm450, %v1477, 0.0
    %1524 = vadd.xlane.f32.xlu0 %v1523
    %v1525 = vpop.xlane.xlu0 %1524
    %v1526 = vsel %vm450, %v1478, 0.0
    %1527 = vadd.xlane.f32.xlu0 %v1526
    %v1528 = vpop.xlane.xlu0 %1527
    %v1529 = vsel %vm450, %v1479, 0.0
    %1530 = vadd.xlane.f32.xlu0 %v1529
    %v1531 = vpop.xlane.xlu0 %1530
    %v1532 = vsel %vm450, %v1480, 0.0
    %1533 = vadd.xlane.f32.xlu0 %v1532
    %v1534 = vpop.xlane.xlu0 %1533
    %v1535 = vsel %vm450, %v1481, 0.0
    %1536 = vadd.xlane.f32.xlu0 %v1535
    %v1537 = vpop.xlane.xlu0 %1536
    %v1538 = vsel %vm450, %v1482, 0.0
    %1539 = vadd.xlane.f32.xlu0 %v1538
    %v1540 = vpop.xlane.xlu0 %1539
    %v1541 = vsel %vm450, %v1483, 0.0
    %1542 = vadd.xlane.f32.xlu0 %v1541
    %v1543 = vpop.xlane.xlu0 %1542
    %v1544 = vsel %vm450, %v1484, 0.0
    %1545 = vadd.xlane.f32.xlu0 %v1544
    %v1546 = vpop.xlane.xlu0 %1545
    %v1547 = vsel %vm450, %v1485, 0.0
    %1548 = vadd.xlane.f32.xlu0 %v1547
    %v1549 = vpop.xlane.xlu0 %1548
    %v1550 = vsel %vm450, %v1486, 0.0
    %1551 = vadd.xlane.f32.xlu0 %v1550
    %v1552 = vpop.xlane.xlu0 %1551
    %v1553 = vsel %vm450, %v1487, 0.0
    %1554 = vadd.xlane.f32.xlu0 %v1553
    %v1555 = vpop.xlane.xlu0 %1554
    %v1556 = vsel %vm450, %v1488, 0.0
    %1557 = vadd.xlane.f32.xlu0 %v1556
    %v1558 = vpop.xlane.xlu0 %1557
    %v1559 = vsel %vm450, %v1489, 0.0
    %1560 = vadd.xlane.f32.xlu0 %v1559
    %v1561 = vpop.xlane.xlu0 %1560
    %v1562 = vsel %vm450, %v1490, 0.0
    %1563 = vadd.xlane.f32.xlu0 %v1562
    %v1564 = vpop.xlane.xlu0 %1563
    %v1565 = vsel %vm450, %v1491, 0.0
    %1566 = vadd.xlane.f32.xlu0 %v1565
    %v1567 = vpop.xlane.xlu0 %1566
    %v1568 = vsel %vm450, %v1492, 0.0
    %1569 = vadd.xlane.f32.xlu0 %v1568
    %v1570 = vpop.xlane.xlu0 %1569
    %v1571 = vsel %vm450, %v1493, 0.0
    %1572 = vadd.xlane.f32.xlu0 %v1571
    %v1573 = vpop.xlane.xlu0 %1572
    %v1574 = vsel %vm450, %v1494, 0.0
    %1575 = vadd.xlane.f32.xlu0 %v1574
    %v1576 = vpop.xlane.xlu0 %1575
    %v1577 = vsel %vm450, %v1495, 0.0
    %1578 = vadd.xlane.f32.xlu0 %v1577
    %v1579 = vpop.xlane.xlu0 %1578
    %v1580 = vsel %vm450, %v1496, 0.0
    %1581 = vadd.xlane.f32.xlu0 %v1580
    %v1582 = vpop.xlane.xlu0 %1581
    %v1583 = vsel %vm450, %v1497, 0.0
    %1584 = vadd.xlane.f32.xlu0 %v1583
    %v1585 = vpop.xlane.xlu0 %1584
    %v1586 = vsel %vm450, %v1498, 0.0
    %1587 = vadd.xlane.f32.xlu0 %v1586
    %v1588 = vpop.xlane.xlu0 %1587
    %v1589 = vsel %vm450, %v1499, 0.0
    %1590 = vadd.xlane.f32.xlu0 %v1589
    %v1591 = vpop.xlane.xlu0 %1590
    %v1592 = vsel %vm450, %v1500, 0.0
    %1593 = vadd.xlane.f32.xlu0 %v1592
    %v1594 = vpop.xlane.xlu0 %1593
    %v1595 = vsel %vm450, %v1501, 0.0
    %1596 = vadd.xlane.f32.xlu0 %v1595
    %v1597 = vpop.xlane.xlu0 %1596
    %v1598 = vmax.f32 %v1504, 1e-24
    %v1599 = vmax.f32 %v1507, 1e-24
    %v1600 = vmax.f32 %v1510, 1e-24
    %v1601 = vmax.f32 %v1513, 1e-24
    %v1602 = vmax.f32 %v1516, 1e-24
    %v1603 = vmax.f32 %v1519, 1e-24
    %v1604 = vmax.f32 %v1522, 1e-24
    %v1605 = vmax.f32 %v1525, 1e-24
    %v1606 = vmax.f32 %v1528, 1e-24
    %v1607 = vmax.f32 %v1531, 1e-24
    %v1608 = vmax.f32 %v1534, 1e-24
    %v1609 = vmax.f32 %v1537, 1e-24
    %v1610 = vmax.f32 %v1540, 1e-24
    %v1611 = vmax.f32 %v1543, 1e-24
    %v1612 = vmax.f32 %v1546, 1e-24
    %v1613 = vmax.f32 %v1549, 1e-24
    %v1614 = vmax.f32 %v1552, 1e-24
    %v1615 = vmax.f32 %v1555, 1e-24
    %v1616 = vmax.f32 %v1558, 1e-24
    %v1617 = vmax.f32 %v1561, 1e-24
    %v1618 = vmax.f32 %v1564, 1e-24
    %v1619 = vmax.f32 %v1567, 1e-24
    %v1620 = vmax.f32 %v1570, 1e-24
    %v1621 = vmax.f32 %v1573, 1e-24
    %v1622 = vmax.f32 %v1576, 1e-24
    %v1623 = vmax.f32 %v1579, 1e-24
    %v1624 = vmax.f32 %v1582, 1e-24
    %v1625 = vmax.f32 %v1585, 1e-24
    %v1626 = vmax.f32 %v1588, 1e-24
    %v1627 = vmax.f32 %v1591, 1e-24
    %v1628 = vmax.f32 %v1594, 1e-24
    %v1629 = vmax.f32 %v1597, 1e-24
    %v1630 = vrsqrt.pop %v1598
    %v1631 = vrsqrt.pop %v1599
    %v1632 = vrsqrt.pop %v1600
    %v1633 = vrsqrt.pop %v1601
    %v1634 = vrsqrt.pop %v1602
    %v1635 = vrsqrt.pop %v1603
    %v1636 = vrsqrt.pop %v1604
    %v1637 = vrsqrt.pop %v1605
    %v1638 = vrsqrt.pop %v1606
    %v1639 = vrsqrt.pop %v1607
    %v1640 = vrsqrt.pop %v1608
    %v1641 = vrsqrt.pop %v1609
    %v1642 = vrsqrt.pop %v1610
    %v1643 = vrsqrt.pop %v1611
    %v1644 = vrsqrt.pop %v1612
    %v1645 = vrsqrt.pop %v1613
    %v1646 = vrsqrt.pop %v1614
    %v1647 = vrsqrt.pop %v1615
    %v1648 = vrsqrt.pop %v1616
    %v1649 = vrsqrt.pop %v1617
    %v1650 = vrsqrt.pop %v1618
    %v1651 = vrsqrt.pop %v1619
    %v1652 = vrsqrt.pop %v1620
    %v1653 = vrsqrt.pop %v1621
    %v1654 = vrsqrt.pop %v1622
    %v1655 = vrsqrt.pop %v1623
    %v1656 = vrsqrt.pop %v1624
    %v1657 = vrsqrt.pop %v1625
    %v1658 = vrsqrt.pop %v1626
    %v1659 = vrsqrt.pop %v1627
    %v1660 = vrsqrt.pop %v1628
    %v1661 = vrsqrt.pop %v1629
    %1662 = vst.msk [vmem:[%s7] sm:$0xff] %vm450, %v1438
    %1663 = vst.msk [vmem:[%s7 + $0x8] sm:$0xff] %vm450, %v1439
    %1664 = vst.msk [vmem:[%s7 + $0x10] sm:$0xff] %vm450, %v1440
    %1665 = vst.msk [vmem:[%s7 + $0x18] sm:$0xff] %vm450, %v1441
    %1666 = vst.msk [vmem:[%s7 + $0x20] sm:$0xff] %vm450, %v1442
    %1667 = vst.msk [vmem:[%s7 + $0x28] sm:$0xff] %vm450, %v1443
    %1668 = vst.msk [vmem:[%s7 + $0x30] sm:$0xff] %vm450, %v1444
    %1669 = vst.msk [vmem:[%s7 + $0x38] sm:$0xff] %vm450, %v1445
    %1670 = vst.msk [vmem:[%s7 + $0x40] sm:$0xff] %vm450, %v1446
    %1671 = vst.msk [vmem:[%s7 + $0x48] sm:$0xff] %vm450, %v1447
    %1672 = vst.msk [vmem:[%s7 + $0x50] sm:$0xff] %vm450, %v1448
    %1673 = vst.msk [vmem:[%s7 + $0x58] sm:$0xff] %vm450, %v1449
    %1674 = vst.msk [vmem:[%s7 + $0x60] sm:$0xff] %vm450, %v1450
    %1675 = vst.msk [vmem:[%s7 + $0x68] sm:$0xff] %vm450, %v1451
    %1676 = vst.msk [vmem:[%s7 + $0x70] sm:$0xff] %vm450, %v1452
    %1677 = vst.msk [vmem:[%s7 + $0x78] sm:$0xff] %vm450, %v1453
    %1678 = vst.msk [vmem:[%s7 + $0x80] sm:$0xff] %vm450, %v1454
    %1679 = vst.msk [vmem:[%s7 + $0x88] sm:$0xff] %vm450, %v1455
    %1680 = vst.msk [vmem:[%s7 + $0x90] sm:$0xff] %vm450, %v1456
    %1681 = vst.msk [vmem:[%s7 + $0x98] sm:$0xff] %vm450, %v1457
    %1682 = vst.msk [vmem:[%s7 + $0xa0] sm:$0xff] %vm450, %v1458
    %1683 = vst.msk [vmem:[%s7 + $0xa8] sm:$0xff] %vm450, %v1459
    %1684 = vst.msk [vmem:[%s7 + $0xb0] sm:$0xff] %vm450, %v1460
    %1685 = vst.msk [vmem:[%s7 + $0xb8] sm:$0xff] %vm450, %v1461
    %1686 = vst.msk [vmem:[%s7 + $0xc0] sm:$0xff] %vm450, %v1462
    %1687 = vst.msk [vmem:[%s7 + $0xc8] sm:$0xff] %vm450, %v1463
    %1688 = vst.msk [vmem:[%s7 + $0xd0] sm:$0xff] %vm450, %v1464
    %1689 = vst.msk [vmem:[%s7 + $0xd8] sm:$0xff] %vm450, %v1465
    %1690 = vst.msk [vmem:[%s7 + $0xe0] sm:$0xff] %vm450, %v1466
    %1691 = vst.msk [vmem:[%s7 + $0xe8] sm:$0xff] %vm450, %v1467
    %1692 = vst.msk [vmem:[%s7 + $0xf0] sm:$0xff] %vm450, %v1468
    %1693 = vst.msk [vmem:[%s7 + $0xf8] sm:$0xff] %vm450, %v1469
    %v1694 = vmul.f32 %v1438, %v1630
    %v1695 = vmul.f32 %v1439, %v1631
    %v1696 = vmul.f32 %v1440, %v1632
    %v1697 = vmul.f32 %v1441, %v1633
    %v1698 = vmul.f32 %v1442, %v1634
    %v1699 = vmul.f32 %v1443, %v1635
    %v1700 = vmul.f32 %v1444, %v1636
    %v1701 = vmul.f32 %v1445, %v1637
    %v1702 = vmul.f32 %v1446, %v1638
    %v1703 = vmul.f32 %v1447, %v1639
    %v1704 = vmul.f32 %v1448, %v1640
    %v1705 = vmul.f32 %v1449, %v1641
    %v1706 = vmul.f32 %v1450, %v1642
    %v1707 = vmul.f32 %v1451, %v1643
    %v1708 = vmul.f32 %v1452, %v1644
    %v1709 = vmul.f32 %v1453, %v1645
    %v1710 = vmul.f32 %v1454, %v1646
    %v1711 = vmul.f32 %v1455, %v1647
    %v1712 = vmul.f32 %v1456, %v1648
    %v1713 = vmul.f32 %v1457, %v1649
    %v1714 = vmul.f32 %v1458, %v1650
    %v1715 = vmul.f32 %v1459, %v1651
    %v1716 = vmul.f32 %v1460, %v1652
    %v1717 = vmul.f32 %v1461, %v1653
    %v1718 = vmul.f32 %v1462, %v1654
    %v1719 = vmul.f32 %v1463, %v1655
    %v1720 = vmul.f32 %v1464, %v1656
    %v1721 = vmul.f32 %v1465, %v1657
    %v1722 = vmul.f32 %v1466, %v1658
    %v1723 = vmul.f32 %v1467, %v1659
    %v1724 = vmul.f32 %v1468, %v1660
    %v1725 = vmul.f32 %v1469, %v1661
    %1726 = vst.msk [vmem:[%s8] sm:$0xff] %vm450, %v1694
    %1727 = vst.msk [vmem:[%s8 + $0x8] sm:$0xff] %vm450, %v1695
    %1728 = vst.msk [vmem:[%s8 + $0x10] sm:$0xff] %vm450, %v1696
    %1729 = vst.msk [vmem:[%s8 + $0x18] sm:$0xff] %vm450, %v1697
    %1730 = vst.msk [vmem:[%s8 + $0x20] sm:$0xff] %vm450, %v1698
    %1731 = vst.msk [vmem:[%s8 + $0x28] sm:$0xff] %vm450, %v1699
    %1732 = vst.msk [vmem:[%s8 + $0x30] sm:$0xff] %vm450, %v1700
    %1733 = vst.msk [vmem:[%s8 + $0x38] sm:$0xff] %vm450, %v1701
    %1734 = vst.msk [vmem:[%s8 + $0x40] sm:$0xff] %vm450, %v1702
    %1735 = vst.msk [vmem:[%s8 + $0x48] sm:$0xff] %vm450, %v1703
    %1736 = vst.msk [vmem:[%s8 + $0x50] sm:$0xff] %vm450, %v1704
    %1737 = vst.msk [vmem:[%s8 + $0x58] sm:$0xff] %vm450, %v1705
    %1738 = vst.msk [vmem:[%s8 + $0x60] sm:$0xff] %vm450, %v1706
    %1739 = vst.msk [vmem:[%s8 + $0x68] sm:$0xff] %vm450, %v1707
    %1740 = vst.msk [vmem:[%s8 + $0x70] sm:$0xff] %vm450, %v1708
    %1741 = vst.msk [vmem:[%s8 + $0x78] sm:$0xff] %vm450, %v1709
    %1742 = vst.msk [vmem:[%s8 + $0x80] sm:$0xff] %vm450, %v1710
    %1743 = vst.msk [vmem:[%s8 + $0x88] sm:$0xff] %vm450, %v1711
    %1744 = vst.msk [vmem:[%s8 + $0x90] sm:$0xff] %vm450, %v1712
    %1745 = vst.msk [vmem:[%s8 + $0x98] sm:$0xff] %vm450, %v1713
    %1746 = vst.msk [vmem:[%s8 + $0xa0] sm:$0xff] %vm450, %v1714
    %1747 = vst.msk [vmem:[%s8 + $0xa8] sm:$0xff] %vm450, %v1715
    %1748 = vst.msk [vmem:[%s8 + $0xb0] sm:$0xff] %vm450, %v1716
    %1749 = vst.msk [vmem:[%s8 + $0xb8] sm:$0xff] %vm450, %v1717
    %1750 = vst.msk [vmem:[%s8 + $0xc0] sm:$0xff] %vm450, %v1718
    %1751 = vst.msk [vmem:[%s8 + $0xc8] sm:$0xff] %vm450, %v1719
    %1752 = vst.msk [vmem:[%s8 + $0xd0] sm:$0xff] %vm450, %v1720
    %1753 = vst.msk [vmem:[%s8 + $0xd8] sm:$0xff] %vm450, %v1721
    %1754 = vst.msk [vmem:[%s8 + $0xe0] sm:$0xff] %vm450, %v1722
    %1755 = vst.msk [vmem:[%s8 + $0xe8] sm:$0xff] %vm450, %v1723
    %1756 = vst.msk [vmem:[%s8 + $0xf0] sm:$0xff] %vm450, %v1724
    %1757 = vst.msk [vmem:[%s8 + $0xf8] sm:$0xff] %vm450, %v1725
  $region37: #{tpu_custom_call.1} parent=0 // pred_fallthru
    _
  // Predicated region
  $region38: #{tpu_custom_call.1} parent=0 // pred_check
    _
  $region39: #{tpu_custom_call.1} parent=0 // pred_check_branch
    %1759 = sbr.rel (0) target = $region41
  $region40: #{tpu_custom_call.1} parent=0 // pred_region
    _
  $region41: #{tpu_custom_call.1} parent=0 // pred_fallthru
    _
  // Predicated region
  $region42: #{tpu_custom_call.1} parent=0 // pred_check
    _
  $region43: #{tpu_custom_call.1} parent=0 // pred_check_branch
    %1761 = sbr.rel (0) target = $region45
  $region44: #{tpu_custom_call.1} parent=0 // pred_region
    _
  $region45: #{tpu_custom_call.1} parent=0 // pred_fallthru
    _
  // Predicated region
  $region46: #{tpu_custom_call.1} parent=0 // pred_check
    _
  $region47: #{tpu_custom_call.1} parent=0 // pred_check_branch
    %1763 = sbr.rel (0) target = $region49
  $region48: #{tpu_custom_call.1} parent=0 // pred_region
    _
  $region49: #{tpu_custom_call.1} parent=0 // pred_fallthru
    _
  // Predicated region
  $region50: #{tpu_custom_call.1} parent=0 // pred_check
    _
  $region51: #{tpu_custom_call.1} parent=0 // pred_check_branch
    %1765 = sbr.rel (0) target = $region53
  $region52: #{tpu_custom_call.1} parent=0 // pred_region
    _
  $region53: #{tpu_custom_call.1} parent=0 // pred_fallthru
    _

</llo_original>
